<compile_context>
chip_gen: v6e
topology: v6e:2x2x1
jax: 0.10.0
libtpu: 0.0.40
codegen_flags: <defaults>
</compile_context>

<pallas_src>
import math
from functools import partial

import jax
import jax.numpy as jnp
from jax.experimental import pallas as pl
from jax.experimental.pallas import tpu as pltpu

ATT_DIM = 20          # key/query dim fixed at 20 in the module
ATT_PAD = 32          # lane-friendly padded width for the 20-dim projections
MLP_HIDDEN = 64       # fixed in the module
NORM = 1.0 / math.sqrt(20.0)
LN_EPS = 1e-5

# Flip to jnp.bfloat16 on v6e/v7x once the batch tile makes the kernel
# MXU-bound (accumulation stays f32 via preferred_element_type; all GRU/LN/MLP
# elementwise math stays f32).  Kept f32 by default for bit-level
# comparability with the f32 reference at these small shapes, and because
# v5e has no bf16 VPU/EUP.
MATMUL_DTYPE = jnp.float32


def _mm(a, b):
    """MXU matmul with f32 accumulation and optional bf16 operand cast."""
    return jnp.dot(a.astype(MATMUL_DTYPE), b.astype(MATMUL_DTYPE),
                   preferred_element_type=jnp.float32)


def slot_attention_kernel(
    # per-step batch-tile inputs (batch folded into the row dim)
    x_ref,        # [Bt*N, D]      nodes 'hidden rep'
    hg_ref,       # [Bt*M, P+D]    cat(h, g) query input; h = first P lanes
    # VMEM-resident fused weights
    wk_ref,       # [D, A_pad]     key weight (zero-padded 20->A_pad)
    wq_ref,       # [P+D, A_pad]   query weight (zero-padded)
    bkq_ref,      # [2, A_pad]     row0 = bk, row1 = bq (zero-padded)
    wv_ref,       # [D, P]         values weight
    wih_ref,      # [P, 3P]        GRU input weights  (r|z|n)
    whh_ref,      # [P, 3P]        GRU hidden weights (r|z|n)
    bias_ref,     # [8, P]  rows: bv, bir+bhr, biz+bhz, bin, bhn, gamma, beta, b2
    w1_ref, b1_ref,   # [P, 64], [1, 64]
    w2_ref,           # [64, P]
    # outputs
    newh_ref,     # [Bt*M, P]      updated particles 'node hidden rep'
    attw_ref,     # [M, Bt*N]      relu(attention), graphs concatenated on lanes
    *, bt, m, n, p,
):
    f32 = jnp.float32
    x = x_ref[...]            # [Bt*N, D]
    hg = hg_ref[...]          # [Bt*M, P+D]
    h = hg[:, :p]             # [Bt*M, P]  (no separate h input / DMA)

    # Projections for ALL graphs in this batch tile: single wide matmuls.
    k = _mm(x, wk_ref[...]) + bkq_ref[0:1, :]     # [Bt*N, A_pad]
    v = _mm(x, wv_ref[...]) + bias_ref[0:1, :]    # [Bt*N, P]
    q = _mm(hg, wq_ref[...]) + bkq_ref[1:2, :]    # [Bt*M, A_pad]

    # Per-graph attention + weighted sum.  attw is produced directly in the
    # lane-dense [M, Bt*N] layout (graphs concatenated along lanes).
    # Static unroll over the small batch tile.
    # TODO(synk): for large Bt switch this to lax.fori_loop / batched einsum.
    att_cols = []
    ws_rows = []
    for b in range(bt):
        qb = q[b * m:(b + 1) * m, :]              # [M, A_pad]
        kb = k[b * n:(b + 1) * n, :]              # [N, A_pad]
        vb = v[b * n:(b + 1) * n, :]              # [N, P]
        # contract dim 1 of q with dim 1 of k: no explicit k.T materialization
        ab = jax.lax.dot_general(
            qb.astype(MATMUL_DTYPE), kb.astype(MATMUL_DTYPE),
            (((1,), (1,)), ((), ())),
            preferred_element_type=f32) * NORM    # [M, N]
        att_cols.append(ab)
        ws_rows.append(_mm(ab, vb))               # [M, P]
    attw_ref[...] = jnp.maximum(jnp.concatenate(att_cols, axis=1), 0.0)   # [M, Bt*N]
    ws = jnp.concatenate(ws_rows, axis=0)                                 # [Bt*M, P]

    # GRUCell(ws, h), PyTorch gate order (r, z, n) -- two fused matmuls.
    gi = _mm(ws, wih_ref[...])                    # [Bt*M, 3P]
    gh = _mm(h, whh_ref[...])                     # [Bt*M, 3P]

    r = jax.nn.sigmoid(gi[:, 0:p] + gh[:, 0:p] + bias_ref[1:2, :])
    z = jax.nn.sigmoid(gi[:, p:2 * p] + gh[:, p:2 * p] + bias_ref[2:3, :])
    ngate = jnp.tanh(gi[:, 2 * p:3 * p] + bias_ref[3:4, :]
                     + r * (gh[:, 2 * p:3 * p] + bias_ref[4:5, :]))
    gru_out = (1.0 - z) * ngate + z * h           # [Bt*M, P]

    # LayerNorm over the last dim -- single-pass fused statistics.
    s1 = jnp.sum(gru_out, axis=1, keepdims=True)
    s2 = jnp.sum(gru_out * gru_out, axis=1, keepdims=True)
    inv_p = 1.0 / p
    mean = s1 * inv_p
    var = s2 * inv_p - mean * mean
    ln = (gru_out - mean) * jax.lax.rsqrt(var + LN_EPS) * bias_ref[5:6, :] + bias_ref[6:7, :]

    # MLP: Linear(P,64) -> ReLU -> Linear(64,P)
    m1 = jnp.maximum(_mm(ln, w1_ref[...]) + b1_ref[...], 0.0)
    m2 = _mm(m1, w2_ref[...]) + bias_ref[7:8, :]

    newh_ref[...] = h + m2


def pack_params(p):
    """Fuse / pack the per-gate & bias parameters into wide slabs (JAX side)."""
    pad = ATT_PAD - ATT_DIM

    def padc(w):  # zero-pad the 20-wide lane dim up to ATT_PAD
        return jnp.pad(w, ((0, 0), (0, pad)))

    packed = {
        "wk": padc(p["wk"]),                                              # [D, A_pad]
        "wq": padc(jnp.concatenate([p["wq_h"], p["wq_g"]], axis=0)),      # [P+D, A_pad]
        "bkq": jnp.concatenate([padc(p["bk"]), padc(p["bq"])], axis=0),   # [2, A_pad]
        "wv": p["wv"],                                                    # [D, P]
        "wih": jnp.concatenate([p["wir"], p["wiz"], p["win"]], axis=1),   # [P, 3P]
        "whh": jnp.concatenate([p["whr"], p["whz"], p["whn"]], axis=1),   # [P, 3P]
        "bias": jnp.concatenate([
            p["bv"],
            p["bir"] + p["bhr"],
            p["biz"] + p["bhz"],
            p["bin"],
            p["bhn"],
            p["gamma"],
            p["beta"],
            p["b2"],
        ], axis=0),                                                       # [8, P]
        "w1": p["w1"], "b1": p["b1"], "w2": p["w2"],
    }
    return packed


def slot_attention_forward(x_nodes, h_part, g_part, packed, *, num_steps=None):
    """Batched forward: x_nodes [B,N,D], h_part [B,M,P], g_part [B,M,D]."""
    B, N, D = x_nodes.shape
    _, M, P = h_part.shape

    if num_steps is None:
        # v7x has 2 TensorCores: keep >= 2 parallel grid steps so both cores
        # get a batch tile.  On single-TC v5e/v6e, num_steps=1 (fully
        # collapsed) avoids one fixed per-step overhead -- set it explicitly.
        num_steps = 2 if (B >= 2 and B % 2 == 0) else 1
    assert B % num_steps == 0, "batch must divide evenly into grid steps"
    Bt = B // num_steps

    # Fold the batch into the matmul row dimension; h travels only inside hg.
    x2d = x_nodes.reshape(B * N, D)
    hg2d = jnp.concatenate([h_part, g_part], axis=2).reshape(B * M, P + D)

    weight_args = (
        packed["wk"], packed["wq"], packed["bkq"], packed["wv"],
        packed["wih"], packed["whh"], packed["bias"],
        packed["w1"], packed["b1"], packed["w2"],
    )

    def resident(arr):
        # Full-array block, same block index every grid step -> VMEM-resident,
        # never re-DMA'd.  (See module TODO re: pl.Buffered(1) at large P.)
        nd = arr.ndim
        return pl.BlockSpec(arr.shape, lambda i, _z=(0,) * nd: _z)

    in_specs = [
        pl.BlockSpec((Bt * N, D), lambda i: (i, 0)),          # x batch tile
        pl.BlockSpec((Bt * M, P + D), lambda i: (i, 0)),      # hg batch tile
    ] + [resident(w) for w in weight_args]

    out_specs = (
        pl.BlockSpec((Bt * M, P), lambda i: (i, 0)),          # newh slab
        pl.BlockSpec((None, M, Bt * N), lambda i: (i, 0, 0)),  # lane-dense attw slab
    )
    out_shape = (
        jax.ShapeDtypeStruct((B * M, P), jnp.float32),
        jax.ShapeDtypeStruct((num_steps, M, Bt * N), jnp.float32),
    )

    kernel = partial(slot_attention_kernel, bt=Bt, m=M, n=N, p=P)

    newh_flat, attw_slab = pl.pallas_call(
        kernel,
        grid=(num_steps,),
        out_shape=out_shape,
        in_specs=in_specs,
        out_specs=out_specs,
        compiler_params=pltpu.CompilerParams(
            dimension_semantics=("parallel",)),               # megacore split on v7x
    )(x2d, hg2d, *weight_args)

    # Layout plumbing back to the module's [B, M, P] / [B, M, N] outputs.
    newh = newh_flat.reshape(B, M, P)
    attw = (attw_slab.reshape(num_steps, M, Bt, N)
            .transpose(0, 2, 1, 3)
            .reshape(B, M, N))
    return newh, attw


def make_params(key, node_input_size, particle_input_size):
    """Deterministic synthetic parameters with the shapes implied by __init__."""
    P = particle_input_size
    D = node_input_size
    ks = jax.random.split(key, 32)
    i = iter(range(32))

    def rn(shape, k):
        return jax.random.normal(k, shape, dtype=jnp.float32) * 0.1

    params = {}
    # key: Linear(D, 20)
    params["wk"] = rn((D, ATT_DIM), ks[next(i)])
    params["bk"] = rn((1, ATT_DIM), ks[next(i)])
    # query: Linear(P + D, 20) -> split into the [P,20] and [D,20] halves
    params["wq_h"] = rn((P, ATT_DIM), ks[next(i)])
    params["wq_g"] = rn((D, ATT_DIM), ks[next(i)])
    params["bq"] = rn((1, ATT_DIM), ks[next(i)])
    # values: Linear(D, P)
    params["wv"] = rn((D, P), ks[next(i)])
    params["bv"] = rn((1, P), ks[next(i)])
    # GRUCell(P, P): per-gate [P, P] (x @ W layout)
    for name in ("wir", "wiz", "win", "whr", "whz", "whn"):
        params[name] = rn((P, P), ks[next(i)])
    for name in ("bir", "biz", "bin", "bhr", "bhz", "bhn"):
        params[name] = rn((1, P), ks[next(i)])
    # LayerNorm(P)
    params["gamma"] = jnp.ones((1, P), jnp.float32)
    params["beta"] = jnp.zeros((1, P), jnp.float32)
    # MLP
    params["w1"] = rn((P, MLP_HIDDEN), ks[next(i)])
    params["b1"] = rn((1, MLP_HIDDEN), ks[next(i)])
    params["w2"] = rn((MLP_HIDDEN, P), ks[next(i)])
    params["b2"] = rn((1, P), ks[next(i)])
    # TrainableEltwiseLayer (unused in forward, kept for shape fidelity)
    params["lin_weights"] = rn((1, P), ks[next(i)])
    return params


def reference_forward_single(x_nodes, h_part, g_part, p):
    """Pure-JAX reference for ONE graph, mirroring the PyTorch forward."""
    k = x_nodes @ p["wk"] + p["bk"]
    v = x_nodes @ p["wv"] + p["bv"]
    q = h_part @ p["wq_h"] + g_part @ p["wq_g"] + p["bq"]
    att = (q @ k.T) * NORM
    attw = jnp.maximum(att, 0.0)
    ws = att @ v
    r = jax.nn.sigmoid(ws @ p["wir"] + p["bir"] + h_part @ p["whr"] + p["bhr"])
    z = jax.nn.sigmoid(ws @ p["wiz"] + p["biz"] + h_part @ p["whz"] + p["bhz"])
    n = jnp.tanh(ws @ p["win"] + p["bin"] + r * (h_part @ p["whn"] + p["bhn"]))
    gru_out = (1.0 - z) * n + z * h_part
    mean = jnp.mean(gru_out, axis=1, keepdims=True)
    var = jnp.mean((gru_out - mean) ** 2, axis=1, keepdims=True)
    ln = (gru_out - mean) / jnp.sqrt(var + LN_EPS) * p["gamma"] + p["beta"]
    m = jnp.maximum(ln @ p["w1"] + p["b1"], 0.0) @ p["w2"] + p["b2"]
    return h_part + m, attw


if __name__ == "__main__":
    node_input_size = 32      # D
    particle_input_size = 32  # P
    B = 4    # number of graphs stacked into the batch
    N = 16   # number of 'nodes' per graph
    M = 8    # number of 'particles' per graph

    root = jax.random.PRNGKey(0)
    k_param, k_x, k_h, k_g = jax.random.split(root, 4)

    params = make_params(k_param, node_input_size, particle_input_size)
    packed = pack_params(params)

    x_nodes = jax.random.normal(k_x, (B, N, node_input_size), dtype=jnp.float32)
    h_part = jax.random.normal(k_h, (B, M, particle_input_size), dtype=jnp.float32)
    g_part = jax.random.normal(k_g, (B, M, node_input_size), dtype=jnp.float32)

    new_h, attw = slot_attention_forward(x_nodes, h_part, g_part, packed)
    jax.block_until_ready((new_h, attw))

    ref_fn = jax.vmap(partial(reference_forward_single, p=params))
    ref_h, ref_attw = ref_fn(x_nodes, h_part, g_part)

    assert jnp.allclose(new_h, ref_h, atol=1e-4, rtol=1e-4), "hidden rep mismatch"
    assert jnp.allclose(attw, ref_attw, atol=1e-4, rtol=1e-4), "attention weights mismatch"

    print("KERNEL_OK")
</pallas_src>

<mosaic_0001>
module attributes {stable_mosaic.version = 11 : i64} {
  func.func @slot_attention_kernel(%arg0: i32, %arg1: memref<32x32xf32, #tpu.memory_space<vmem>>, %arg2: memref<16x64xf32, #tpu.memory_space<vmem>>, %arg3: memref<32x32xf32, #tpu.memory_space<vmem>>, %arg4: memref<64x32xf32, #tpu.memory_space<vmem>>, %arg5: memref<2x32xf32, #tpu.memory_space<vmem>>, %arg6: memref<32x32xf32, #tpu.memory_space<vmem>>, %arg7: memref<32x96xf32, #tpu.memory_space<vmem>>, %arg8: memref<32x96xf32, #tpu.memory_space<vmem>>, %arg9: memref<8x32xf32, #tpu.memory_space<vmem>>, %arg10: memref<32x64xf32, #tpu.memory_space<vmem>>, %arg11: memref<1x64xf32, #tpu.memory_space<vmem>>, %arg12: memref<64x32xf32, #tpu.memory_space<vmem>>, %arg13: memref<16x32xf32, #tpu.memory_space<vmem>>, %arg14: memref<1x8x32xf32, #tpu.memory_space<vmem>>) attributes {dimension_semantics = [#tpu.dimension_semantics<parallel>], iteration_bounds = array<i64: 2>, scalar_prefetch = 0 : i64, scratch_operands = 0 : i64, tpu.core_type = #tpu.core_type<tc>, window_params = [{transform_indices = @transform_0, window_bounds = array<i64: 32, 32>}, {transform_indices = @transform_1, window_bounds = array<i64: 16, 64>}, {pipeline_mode = #tpu.pipeline_mode<synchronous>, transform_indices = @transform_2, window_bounds = array<i64: 32, 32>}, {pipeline_mode = #tpu.pipeline_mode<synchronous>, transform_indices = @transform_3, window_bounds = array<i64: 64, 32>}, {pipeline_mode = #tpu.pipeline_mode<synchronous>, transform_indices = @transform_4, window_bounds = array<i64: 2, 32>}, {pipeline_mode = #tpu.pipeline_mode<synchronous>, transform_indices = @transform_5, window_bounds = array<i64: 32, 32>}, {pipeline_mode = #tpu.pipeline_mode<synchronous>, transform_indices = @transform_6, window_bounds = array<i64: 32, 96>}, {pipeline_mode = #tpu.pipeline_mode<synchronous>, transform_indices = @transform_7, window_bounds = array<i64: 32, 96>}, {pipeline_mode = #tpu.pipeline_mode<synchronous>, transform_indices = @transform_8, window_bounds = array<i64: 8, 32>}, {pipeline_mode = #tpu.pipeline_mode<synchronous>, transform_indices = @transform_9, window_bounds = array<i64: 32, 64>}, {pipeline_mode = #tpu.pipeline_mode<synchronous>, transform_indices = @transform_10, window_bounds = array<i64: 1, 64>}, {pipeline_mode = #tpu.pipeline_mode<synchronous>, transform_indices = @transform_11, window_bounds = array<i64: 64, 32>}, {transform_indices = @transform_12, window_bounds = array<i64: 16, 32>}, {transform_indices = @transform_13, window_bounds = array<i64: 1, 8, 32>}]} {
    %c0 = arith.constant 0 : index
    %c0_0 = arith.constant 0 : index
    %0 = vector.load %arg1[%c0, %c0_0] : memref<32x32xf32, #tpu.memory_space<vmem>>, vector<32x32xf32>
    %c0_1 = arith.constant 0 : index
    %c0_2 = arith.constant 0 : index
    %1 = vector.load %arg2[%c0_1, %c0_2] : memref<16x64xf32, #tpu.memory_space<vmem>>, vector<16x64xf32>
    %2 = vector.extract_strided_slice %1 {offsets = [0, 0], sizes = [16, 32], strides = [1, 1]} : vector<16x64xf32> to vector<16x32xf32>
    %c0_3 = arith.constant 0 : index
    %c0_4 = arith.constant 0 : index
    %3 = vector.load %arg3[%c0_3, %c0_4] : memref<32x32xf32, #tpu.memory_space<vmem>>, vector<32x32xf32>
    %cst = arith.constant dense<0.000000e+00> : vector<32x32xf32>
    %4 = tpu.matmul %0, %3, %cst {dimension_numbers = #tpu.dot_dimension_numbers<[1], [0], [0], [1], [0, 0, 1, 1], [], []>} : vector<32x32xf32>, vector<32x32xf32>, vector<32x32xf32> -> vector<32x32xf32>
    %c0_5 = arith.constant 0 : index
    %c0_6 = arith.constant 0 : index
    %5 = vector.load %arg5[%c0_5, %c0_6] : memref<2x32xf32, #tpu.memory_space<vmem>>, vector<1x32xf32>
    %6 = vector.broadcast %5 : vector<1x32xf32> to vector<32x32xf32>
    %7 = arith.addf %4, %6 : vector<32x32xf32>
    %c0_7 = arith.constant 0 : index
    %c0_8 = arith.constant 0 : index
    %8 = vector.load %arg6[%c0_7, %c0_8] : memref<32x32xf32, #tpu.memory_space<vmem>>, vector<32x32xf32>
    %cst_9 = arith.constant dense<0.000000e+00> : vector<32x32xf32>
    %9 = tpu.matmul %0, %8, %cst_9 {dimension_numbers = #tpu.dot_dimension_numbers<[1], [0], [0], [1], [0, 0, 1, 1], [], []>} : vector<32x32xf32>, vector<32x32xf32>, vector<32x32xf32> -> vector<32x32xf32>
    %c0_10 = arith.constant 0 : index
    %c0_11 = arith.constant 0 : index
    %10 = vector.load %arg9[%c0_10, %c0_11] : memref<8x32xf32, #tpu.memory_space<vmem>>, vector<1x32xf32>
    %11 = vector.broadcast %10 : vector<1x32xf32> to vector<32x32xf32>
    %12 = arith.addf %9, %11 : vector<32x32xf32>
    %c0_12 = arith.constant 0 : index
    %c0_13 = arith.constant 0 : index
    %13 = vector.load %arg4[%c0_12, %c0_13] : memref<64x32xf32, #tpu.memory_space<vmem>>, vector<64x32xf32>
    %cst_14 = arith.constant dense<0.000000e+00> : vector<16x32xf32>
    %14 = tpu.matmul %1, %13, %cst_14 {dimension_numbers = #tpu.dot_dimension_numbers<[1], [0], [0], [1], [0, 0, 1, 1], [], []>} : vector<16x64xf32>, vector<64x32xf32>, vector<16x32xf32> -> vector<16x32xf32>
    %c1 = arith.constant 1 : index
    %c0_15 = arith.constant 0 : index
    %15 = vector.load %arg5[%c1, %c0_15] : memref<2x32xf32, #tpu.memory_space<vmem>>, vector<1x32xf32>
    %16 = vector.broadcast %15 : vector<1x32xf32> to vector<16x32xf32>
    %17 = arith.addf %14, %16 : vector<16x32xf32>
    %18 = vector.extract_strided_slice %17 {offsets = [0, 0], sizes = [8, 32], strides = [1, 1]} : vector<16x32xf32> to vector<8x32xf32>
    %19 = vector.extract_strided_slice %7 {offsets = [0, 0], sizes = [16, 32], strides = [1, 1]} : vector<32x32xf32> to vector<16x32xf32>
    %20 = vector.extract_strided_slice %12 {offsets = [0, 0], sizes = [16, 32], strides = [1, 1]} : vector<32x32xf32> to vector<16x32xf32>
    %cst_16 = arith.constant dense<0.000000e+00> : vector<8x16xf32>
    %21 = tpu.matmul %18, %19, %cst_16 {dimension_numbers = #tpu.dot_dimension_numbers<[1], [1], [0], [0], [0, 0, 1, 0], [], []>} : vector<8x32xf32>, vector<16x32xf32>, vector<8x16xf32> -> vector<8x16xf32>
    %cst_17 = arith.constant 0.223606795 : f32
    %22 = vector.broadcast %cst_17 : f32 to vector<8x16xf32>
    %23 = arith.mulf %21, %22 : vector<8x16xf32>
    %cst_18 = arith.constant dense<0.000000e+00> : vector<8x32xf32>
    %24 = tpu.matmul %23, %20, %cst_18 {dimension_numbers = #tpu.dot_dimension_numbers<[1], [0], [0], [1], [0, 0, 1, 1], [], []>} : vector<8x16xf32>, vector<16x32xf32>, vector<8x32xf32> -> vector<8x32xf32>
    %25 = vector.extract_strided_slice %17 {offsets = [8, 0], sizes = [8, 32], strides = [1, 1]} : vector<16x32xf32> to vector<8x32xf32>
    %26 = vector.extract_strided_slice %7 {offsets = [16, 0], sizes = [16, 32], strides = [1, 1]} : vector<32x32xf32> to vector<16x32xf32>
    %27 = vector.extract_strided_slice %12 {offsets = [16, 0], sizes = [16, 32], strides = [1, 1]} : vector<32x32xf32> to vector<16x32xf32>
    %cst_19 = arith.constant dense<0.000000e+00> : vector<8x16xf32>
    %28 = tpu.matmul %25, %26, %cst_19 {dimension_numbers = #tpu.dot_dimension_numbers<[1], [1], [0], [0], [0, 0, 1, 0], [], []>} : vector<8x32xf32>, vector<16x32xf32>, vector<8x16xf32> -> vector<8x16xf32>
    %cst_20 = arith.constant 0.223606795 : f32
    %29 = vector.broadcast %cst_20 : f32 to vector<8x16xf32>
    %30 = arith.mulf %28, %29 : vector<8x16xf32>
    %cst_21 = arith.constant dense<0.000000e+00> : vector<8x32xf32>
    %31 = tpu.matmul %30, %27, %cst_21 {dimension_numbers = #tpu.dot_dimension_numbers<[1], [0], [0], [1], [0, 0, 1, 1], [], []>} : vector<8x16xf32>, vector<16x32xf32>, vector<8x32xf32> -> vector<8x32xf32>
    %32 = tpu.concatenate %23, %30 in 1 : vector<8x16xf32>, vector<8x16xf32> -> vector<8x32xf32>
    %cst_22 = arith.constant 0.000000e+00 : f32
    %33 = vector.broadcast %cst_22 : f32 to vector<8x32xf32>
    %34 = arith.maximumf %32, %33 : vector<8x32xf32>
    %c0_23 = arith.constant 0 : index
    %c0_24 = arith.constant 0 : index
    %c0_25 = arith.constant 0 : index
    %35 = vector.load %arg14[%c0_23, %c0_24, %c0_25] : memref<1x8x32xf32, #tpu.memory_space<vmem>>, vector<1x8x32xf32>
    %36 = vector.shape_cast %35 : vector<1x8x32xf32> to vector<8x32xf32>
    %37 = vector.shape_cast %34 : vector<8x32xf32> to vector<1x8x32xf32>
    tpu.vector_store %arg14[%c0_23, %c0_24, %c0_25], %37 {strides = array<i32>} : memref<1x8x32xf32, #tpu.memory_space<vmem>>, vector<1x8x32xf32>,
    %38 = tpu.concatenate %24, %31 in 0 : vector<8x32xf32>, vector<8x32xf32> -> vector<16x32xf32>
    %c0_26 = arith.constant 0 : index
    %c0_27 = arith.constant 0 : index
    %39 = vector.load %arg7[%c0_26, %c0_27] : memref<32x96xf32, #tpu.memory_space<vmem>>, vector<32x96xf32>
    %cst_28 = arith.constant dense<0.000000e+00> : vector<16x96xf32>
    %40 = tpu.matmul %38, %39, %cst_28 {dimension_numbers = #tpu.dot_dimension_numbers<[1], [0], [0], [1], [0, 0, 1, 1], [], []>} : vector<16x32xf32>, vector<32x96xf32>, vector<16x96xf32> -> vector<16x96xf32>
    %c0_29 = arith.constant 0 : index
    %c0_30 = arith.constant 0 : index
    %41 = vector.load %arg8[%c0_29, %c0_30] : memref<32x96xf32, #tpu.memory_space<vmem>>, vector<32x96xf32>
    %cst_31 = arith.constant dense<0.000000e+00> : vector<16x96xf32>
    %42 = tpu.matmul %2, %41, %cst_31 {dimension_numbers = #tpu.dot_dimension_numbers<[1], [0], [0], [1], [0, 0, 1, 1], [], []>} : vector<16x32xf32>, vector<32x96xf32>, vector<16x96xf32> -> vector<16x96xf32>
    %43 = vector.extract_strided_slice %40 {offsets = [0, 0], sizes = [16, 32], strides = [1, 1]} : vector<16x96xf32> to vector<16x32xf32>
    %44 = vector.extract_strided_slice %42 {offsets = [0, 0], sizes = [16, 32], strides = [1, 1]} : vector<16x96xf32> to vector<16x32xf32>
    %45 = arith.addf %43, %44 : vector<16x32xf32>
    %c1_32 = arith.constant 1 : index
    %c0_33 = arith.constant 0 : index
    %46 = vector.load %arg9[%c1_32, %c0_33] : memref<8x32xf32, #tpu.memory_space<vmem>>, vector<1x32xf32>
    %47 = vector.broadcast %46 : vector<1x32xf32> to vector<16x32xf32>
    %48 = arith.addf %45, %47 : vector<16x32xf32>
    %49 = arith.negf %48 : vector<16x32xf32>
    %50 = math.exp %49 : vector<16x32xf32>
    %cst_34 = arith.constant 1.000000e+00 : f32
    %51 = vector.broadcast %cst_34 : f32 to vector<16x32xf32>
    %52 = arith.addf %51, %50 : vector<16x32xf32>
    %53 = arith.divf %51, %52 : vector<16x32xf32>
    %54 = vector.extract_strided_slice %40 {offsets = [0, 32], sizes = [16, 32], strides = [1, 1]} : vector<16x96xf32> to vector<16x32xf32>
    %55 = vector.extract_strided_slice %42 {offsets = [0, 32], sizes = [16, 32], strides = [1, 1]} : vector<16x96xf32> to vector<16x32xf32>
    %56 = arith.addf %54, %55 : vector<16x32xf32>
    %c2 = arith.constant 2 : index
    %c0_35 = arith.constant 0 : index
    %57 = vector.load %arg9[%c2, %c0_35] : memref<8x32xf32, #tpu.memory_space<vmem>>, vector<1x32xf32>
    %58 = vector.broadcast %57 : vector<1x32xf32> to vector<16x32xf32>
    %59 = arith.addf %56, %58 : vector<16x32xf32>
    %60 = arith.negf %59 : vector<16x32xf32>
    %61 = math.exp %60 : vector<16x32xf32>
    %cst_36 = arith.constant 1.000000e+00 : f32
    %62 = vector.broadcast %cst_36 : f32 to vector<16x32xf32>
    %63 = arith.addf %62, %61 : vector<16x32xf32>
    %64 = arith.divf %62, %63 : vector<16x32xf32>
    %65 = vector.extract_strided_slice %40 {offsets = [0, 64], sizes = [16, 32], strides = [1, 1]} : vector<16x96xf32> to vector<16x32xf32>
    %c3 = arith.constant 3 : index
    %c0_37 = arith.constant 0 : index
    %66 = vector.load %arg9[%c3, %c0_37] : memref<8x32xf32, #tpu.memory_space<vmem>>, vector<1x32xf32>
    %67 = vector.broadcast %66 : vector<1x32xf32> to vector<16x32xf32>
    %68 = arith.addf %65, %67 : vector<16x32xf32>
    %69 = vector.extract_strided_slice %42 {offsets = [0, 64], sizes = [16, 32], strides = [1, 1]} : vector<16x96xf32> to vector<16x32xf32>
    %c4 = arith.constant 4 : index
    %c0_38 = arith.constant 0 : index
    %70 = vector.load %arg9[%c4, %c0_38] : memref<8x32xf32, #tpu.memory_space<vmem>>, vector<1x32xf32>
    %71 = vector.broadcast %70 : vector<1x32xf32> to vector<16x32xf32>
    %72 = arith.addf %69, %71 : vector<16x32xf32>
    %73 = arith.mulf %53, %72 : vector<16x32xf32>
    %74 = arith.addf %68, %73 : vector<16x32xf32>
    %75 = math.tanh %74 : vector<16x32xf32>
    %cst_39 = arith.constant 1.000000e+00 : f32
    %76 = vector.broadcast %cst_39 : f32 to vector<16x32xf32>
    %77 = arith.subf %76, %64 : vector<16x32xf32>
    %78 = arith.mulf %77, %75 : vector<16x32xf32>
    %79 = arith.mulf %64, %2 : vector<16x32xf32>
    %80 = arith.addf %78, %79 : vector<16x32xf32>
    %cst_40 = arith.constant dense<0.000000e+00> : vector<16xf32>
    %81 = vector.multi_reduction <add>, %80, %cst_40 [1] : vector<16x32xf32> to vector<16xf32>
    %82 = vector.shape_cast %81 : vector<16xf32> to vector<16x1xf32>
    %83 = arith.mulf %80, %80 : vector<16x32xf32>
    %cst_41 = arith.constant dense<0.000000e+00> : vector<16xf32>
    %84 = vector.multi_reduction <add>, %83, %cst_41 [1] : vector<16x32xf32> to vector<16xf32>
    %85 = vector.shape_cast %84 : vector<16xf32> to vector<16x1xf32>
    %cst_42 = arith.constant 3.125000e-02 : f32
    %86 = vector.broadcast %cst_42 : f32 to vector<16x1xf32>
    %87 = arith.mulf %82, %86 : vector<16x1xf32>
    %cst_43 = arith.constant 3.125000e-02 : f32
    %88 = vector.broadcast %cst_43 : f32 to vector<16x1xf32>
    %89 = arith.mulf %85, %88 : vector<16x1xf32>
    %90 = arith.mulf %87, %87 : vector<16x1xf32>
    %91 = arith.subf %89, %90 : vector<16x1xf32>
    %92 = vector.broadcast %87 : vector<16x1xf32> to vector<16x32xf32>
    %93 = arith.subf %80, %92 : vector<16x32xf32>
    %cst_44 = arith.constant 9.99999974E-6 : f32
    %94 = vector.broadcast %cst_44 : f32 to vector<16x1xf32>
    %95 = arith.addf %91, %94 : vector<16x1xf32>
    %96 = math.rsqrt %95 : vector<16x1xf32>
    %97 = vector.broadcast %96 : vector<16x1xf32> to vector<16x32xf32>
    %98 = arith.mulf %93, %97 : vector<16x32xf32>
    %c5 = arith.constant 5 : index
    %c0_45 = arith.constant 0 : index
    %99 = vector.load %arg9[%c5, %c0_45] : memref<8x32xf32, #tpu.memory_space<vmem>>, vector<1x32xf32>
    %100 = vector.broadcast %99 : vector<1x32xf32> to vector<16x32xf32>
    %101 = arith.mulf %98, %100 : vector<16x32xf32>
    %c6 = arith.constant 6 : index
    %c0_46 = arith.constant 0 : index
    %102 = vector.load %arg9[%c6, %c0_46] : memref<8x32xf32, #tpu.memory_space<vmem>>, vector<1x32xf32>
    %103 = vector.broadcast %102 : vector<1x32xf32> to vector<16x32xf32>
    %104 = arith.addf %101, %103 : vector<16x32xf32>
    %c0_47 = arith.constant 0 : index
    %c0_48 = arith.constant 0 : index
    %105 = vector.load %arg10[%c0_47, %c0_48] : memref<32x64xf32, #tpu.memory_space<vmem>>, vector<32x64xf32>
    %cst_49 = arith.constant dense<0.000000e+00> : vector<16x64xf32>
    %106 = tpu.matmul %104, %105, %cst_49 {dimension_numbers = #tpu.dot_dimension_numbers<[1], [0], [0], [1], [0, 0, 1, 1], [], []>} : vector<16x32xf32>, vector<32x64xf32>, vector<16x64xf32> -> vector<16x64xf32>
    %c0_50 = arith.constant 0 : index
    %c0_51 = arith.constant 0 : index
    %107 = vector.load %arg11[%c0_50, %c0_51] : memref<1x64xf32, #tpu.memory_space<vmem>>, vector<1x64xf32>
    %108 = vector.broadcast %107 : vector<1x64xf32> to vector<16x64xf32>
    %109 = arith.addf %106, %108 : vector<16x64xf32>
    %cst_52 = arith.constant 0.000000e+00 : f32
    %110 = vector.broadcast %cst_52 : f32 to vector<16x64xf32>
    %111 = arith.maximumf %109, %110 : vector<16x64xf32>
    %c0_53 = arith.constant 0 : index
    %c0_54 = arith.constant 0 : index
    %112 = vector.load %arg12[%c0_53, %c0_54] : memref<64x32xf32, #tpu.memory_space<vmem>>, vector<64x32xf32>
    %cst_55 = arith.constant dense<0.000000e+00> : vector<16x32xf32>
    %113 = tpu.matmul %111, %112, %cst_55 {dimension_numbers = #tpu.dot_dimension_numbers<[1], [0], [0], [1], [0, 0, 1, 1], [], []>} : vector<16x64xf32>, vector<64x32xf32>, vector<16x32xf32> -> vector<16x32xf32>
    %c7 = arith.constant 7 : index
    %c0_56 = arith.constant 0 : index
    %114 = vector.load %arg9[%c7, %c0_56] : memref<8x32xf32, #tpu.memory_space<vmem>>, vector<1x32xf32>
    %115 = vector.broadcast %114 : vector<1x32xf32> to vector<16x32xf32>
    %116 = arith.addf %113, %115 : vector<16x32xf32>
    %117 = arith.addf %2, %116 : vector<16x32xf32>
    %c0_57 = arith.constant 0 : index
    %c0_58 = arith.constant 0 : index
    %118 = vector.load %arg13[%c0_57, %c0_58] : memref<16x32xf32, #tpu.memory_space<vmem>>, vector<16x32xf32>
    tpu.vector_store %arg13[%c0_57, %c0_58], %117 {strides = array<i32>} : memref<16x32xf32, #tpu.memory_space<vmem>>, vector<16x32xf32>,
    return
  }
  func.func @transform_0(%arg0: i32) -> (i32, i32) {
    %c0_i32 = arith.constant 0 : i32
    %c0_i32_0 = arith.constant 0 : i32
    return %arg0, %c0_i32 : i32, i32
  }
  func.func @transform_1(%arg0: i32) -> (i32, i32) {
    %c0_i32 = arith.constant 0 : i32
    %c0_i32_0 = arith.constant 0 : i32
    return %arg0, %c0_i32 : i32, i32
  }
  func.func @transform_2(%arg0: i32) -> (i32, i32) {
    %c0_i32 = arith.constant 0 : i32
    %c0_i32_0 = arith.constant 0 : i32
    %c0_i32_1 = arith.constant 0 : i32
    return %c0_i32, %c0_i32_0 : i32, i32
  }
  func.func @transform_3(%arg0: i32) -> (i32, i32) {
    %c0_i32 = arith.constant 0 : i32
    %c0_i32_0 = arith.constant 0 : i32
    %c0_i32_1 = arith.constant 0 : i32
    return %c0_i32, %c0_i32_0 : i32, i32
  }
  func.func @transform_4(%arg0: i32) -> (i32, i32) {
    %c0_i32 = arith.constant 0 : i32
    %c0_i32_0 = arith.constant 0 : i32
    %c0_i32_1 = arith.constant 0 : i32
    return %c0_i32, %c0_i32_0 : i32, i32
  }
  func.func @transform_5(%arg0: i32) -> (i32, i32) {
    %c0_i32 = arith.constant 0 : i32
    %c0_i32_0 = arith.constant 0 : i32
    %c0_i32_1 = arith.constant 0 : i32
    return %c0_i32, %c0_i32_0 : i32, i32
  }
  func.func @transform_6(%arg0: i32) -> (i32, i32) {
    %c0_i32 = arith.constant 0 : i32
    %c0_i32_0 = arith.constant 0 : i32
    %c0_i32_1 = arith.constant 0 : i32
    return %c0_i32, %c0_i32_0 : i32, i32
  }
  func.func @transform_7(%arg0: i32) -> (i32, i32) {
    %c0_i32 = arith.constant 0 : i32
    %c0_i32_0 = arith.constant 0 : i32
    %c0_i32_1 = arith.constant 0 : i32
    return %c0_i32, %c0_i32_0 : i32, i32
  }
  func.func @transform_8(%arg0: i32) -> (i32, i32) {
    %c0_i32 = arith.constant 0 : i32
    %c0_i32_0 = arith.constant 0 : i32
    %c0_i32_1 = arith.constant 0 : i32
    return %c0_i32, %c0_i32_0 : i32, i32
  }
  func.func @transform_9(%arg0: i32) -> (i32, i32) {
    %c0_i32 = arith.constant 0 : i32
    %c0_i32_0 = arith.constant 0 : i32
    %c0_i32_1 = arith.constant 0 : i32
    return %c0_i32, %c0_i32_0 : i32, i32
  }
  func.func @transform_10(%arg0: i32) -> (i32, i32) {
    %c0_i32 = arith.constant 0 : i32
    %c0_i32_0 = arith.constant 0 : i32
    %c0_i32_1 = arith.constant 0 : i32
    return %c0_i32, %c0_i32_0 : i32, i32
  }
  func.func @transform_11(%arg0: i32) -> (i32, i32) {
    %c0_i32 = arith.constant 0 : i32
    %c0_i32_0 = arith.constant 0 : i32
    %c0_i32_1 = arith.constant 0 : i32
    return %c0_i32, %c0_i32_0 : i32, i32
  }
  func.func @transform_12(%arg0: i32) -> (i32, i32) {
    %c0_i32 = arith.constant 0 : i32
    %c0_i32_0 = arith.constant 0 : i32
    return %arg0, %c0_i32 : i32, i32
  }
  func.func @transform_13(%arg0: i32) -> (i32, i32, i32) {
    %c0_i32 = arith.constant 0 : i32
    %c0_i32_0 = arith.constant 0 : i32
    %c0_i32_1 = arith.constant 0 : i32
    return %arg0, %c0_i32, %c0_i32_0 : i32, i32, i32
  }
}

</mosaic_0001>

<llo_original>
// kernel: tpu_custom_call.1
$region0: #{tpu_custom_call.1}
  #allocation0 [shape = 'u32[]', space=smem, size = 0x4, offset = 0x4, fixed_abs, tag = 'smem constant byte address 0x4 - core index']
  #allocation1 [shape = 'u32[144,128]{1,0:T(1,128)}', space=vmem, size = 0x12000, scoped, tag = 'internal scratch']
  %s0 = inlined_call_operand.vmem [shape: f32[64,32], index: 0, kind: input, shape index: {}]
  %s1 = inlined_call_operand.vmem [shape: f32[32,64], index: 1, kind: input, shape index: {}]
  %s2 = inlined_call_operand.vmem [shape: f32[32,32], index: 2, kind: input, shape index: {}]
  %s3 = inlined_call_operand.vmem [shape: f32[64,32], index: 3, kind: input, shape index: {}]
  %s4 = inlined_call_operand.vmem [shape: f32[2,32], index: 4, kind: input, shape index: {}]
  %s5 = inlined_call_operand.vmem [shape: f32[32,32], index: 5, kind: input, shape index: {}]
  %s6 = inlined_call_operand.vmem [shape: f32[32,96], index: 6, kind: input, shape index: {}]
  %s7 = inlined_call_operand.vmem [shape: f32[32,96], index: 7, kind: input, shape index: {}]
  %s8 = inlined_call_operand.vmem [shape: f32[8,32], index: 8, kind: input, shape index: {}]
  %s9 = inlined_call_operand.vmem [shape: f32[32,64], index: 9, kind: input, shape index: {}]
  %s10 = inlined_call_operand.vmem [shape: f32[1,64], index: 10, kind: input, shape index: {}]
  %s11 = inlined_call_operand.vmem [shape: f32[64,32], index: 11, kind: input, shape index: {}]
  %s12 = inlined_call_operand.hbm [shape: f32[32,32], index: 12, kind: output, shape index: {0}]
  %s13 = inlined_call_operand.hbm [shape: f32[2,8,32], index: 13, kind: output, shape index: {1}]
  %14 = xla_tuple %s12, %s13
  %s15 = sld [smem:[#allocation0]]
  $region89: #{tpu_custom_call.1} parent=0
    _
  %s17 = ssub.s32 1, %s15
  %s18 = scalar_select 0, %s17, %s15
  $region1: #{tpu_custom_call.1} parent=0
    #allocation2 [shape = 'u8[16384]{0}', space=vmem, size = 0x4000, scoped, tag = 'output window, operand 0']
    #allocation3 [shape = 's32[2]{0}', space=sflag, size = 0x8, scoped, tag = 'scoped memory for tpu_custom_call.1']
    #allocation4 [shape = 'u8[8192]{0}', space=vmem, size = 0x2000, scoped, tag = 'output window, operand 1']
    #allocation5 [shape = 's32[2]{0}', space=sflag, size = 0x8, scoped, tag = 'scoped memory for tpu_custom_call.1']
    %19 = vsyncpa [#allocation3], 0
    %s20 = scalar_lea.sflag [#allocation3], 1
    %21 = vsyncpa %s20, 0
    %22 = vsyncpa [#allocation5], 0
    %s23 = scalar_lea.sflag [#allocation5], 1
    %24 = vsyncpa %s23, 0
    loop: start=0, step=1, limit=4
    $region2: #{tpu_custom_call.1} parent=1 // loop_pre_header
      _
    $region3: #{tpu_custom_call.1} parent=1 // loop_header
      %s26 = sphi 0, %s30
      %p27 = scmp.ge.s32.totalorder %s26, 4
      %s36 = sphi 0, %s38
      %s39 = sphi 0, %s36
      %s40 = sphi 0, %s39
      %s56 = sphi 0, %s40
      %s62 = sphi 0, %s64
      %s65 = sphi 0, %s62
      %s66 = sphi 0, %s65
      %s82 = sphi 0, %s66
      %s86 = sphi 0, %s86
      %s88 = sphi 0, %s86
      %s89 = sphi 0, %s88
      %s103 = sphi 0, %s89
      %s107 = sphi 0, %s107
      %s109 = sphi 0, %s107
      %s110 = sphi 0, %s109
      %s124 = sphi 0, %s110
      %s128 = sphi 0, %s128
      %s130 = sphi 0, %s128
      %s131 = sphi 0, %s130
      %s145 = sphi 0, %s131
      %s149 = sphi 0, %s149
      %s151 = sphi 0, %s149
      %s152 = sphi 0, %s151
      %s166 = sphi 0, %s152
      %s170 = sphi 0, %s170
      %s172 = sphi 0, %s170
      %s173 = sphi 0, %s172
      %s187 = sphi 0, %s173
      %s191 = sphi 0, %s191
      %s193 = sphi 0, %s191
      %s194 = sphi 0, %s193
      %s208 = sphi 0, %s194
      %s212 = sphi 0, %s212
      %s214 = sphi 0, %s212
      %s215 = sphi 0, %s214
      %s229 = sphi 0, %s215
      %s233 = sphi 0, %s233
      %s235 = sphi 0, %s233
      %s236 = sphi 0, %s235
      %s250 = sphi 0, %s236
      %s254 = sphi 0, %s254
      %s256 = sphi 0, %s254
      %s257 = sphi 0, %s256
      %s271 = sphi 0, %s257
      %s275 = sphi 0, %s275
      %s277 = sphi 0, %s275
      %s278 = sphi 0, %s277
      %s292 = sphi 0, %s278
      %s298 = sphi 0, %s300
      %s301 = sphi 0, %s298
      %s302 = sphi 0, %s301
      %s318 = sphi 0, %s302
      %s324 = sphi 0, %s326
      %s327 = sphi 0, %s324
      %s328 = sphi 0, %s327
      %s344 = sphi 0, %s328
    $region4: #{tpu_custom_call.1} parent=1 // loop_header_branch
      %29 = sbr.rel (%p27) target = $region8
    $region5: #{tpu_custom_call.1} parent=1 // loop_body
      %s31 = ssub.s32 %s26, 1
      %s32 = ssub.s32 %s26, 2
      %s33 = sadd.s32 %s26, 1
      %s34 = ssub.s32 %s26, %s33
      %p35 = scmp.eq.s32.totalorder %s34, 0
      %s37 = sadd.s32 %s36, 1
      %s38 = scalar_select %p35, %s36, %s37
      %p41 = pneg %p35
      %p42 = scmp.eq.s32.totalorder %s26, 1
      %p43 = por %p41, %p42
      %p44 = scmp.ne.s32.totalorder %s36, %s39
      %p45 = scmp.eq.s32.totalorder %s26, 0
      %p46 = por %p44, %p45
      %p47 = scmp.ne.s32.totalorder %s36, %s39
      %p48 = scmp.eq.s32.totalorder %s31, 1
      %p49 = por %p47, %p48
      %p50 = scmp.ne.s32.totalorder %s39, %s40
      %p51 = scmp.eq.s32.totalorder %s31, 0
      %p52 = por %p50, %p51
      %p53 = scmp.ne.s32.totalorder %s39, %s40
      %p54 = scmp.eq.s32.totalorder %s32, 1
      %p55 = por %p53, %p54
      %p57 = scmp.ne.s32.totalorder %s40, %s56
      %p58 = scmp.eq.s32.totalorder %s32, 0
      %p59 = por %p57, %p58
      %s60 = ssub.s32 %s26, %s33
      %p61 = scmp.eq.s32.totalorder %s60, 0
      %s63 = sadd.s32 %s62, 1
      %s64 = scalar_select %p61, %s62, %s63
      %p67 = pneg %p61
      %p68 = scmp.eq.s32.totalorder %s26, 1
      %p69 = por %p67, %p68
      %p70 = scmp.ne.s32.totalorder %s62, %s65
      %p71 = scmp.eq.s32.totalorder %s26, 0
      %p72 = por %p70, %p71
      %p73 = scmp.ne.s32.totalorder %s62, %s65
      %p74 = scmp.eq.s32.totalorder %s31, 1
      %p75 = por %p73, %p74
      %p76 = scmp.ne.s32.totalorder %s65, %s66
      %p77 = scmp.eq.s32.totalorder %s31, 0
      %p78 = por %p76, %p77
      %p79 = scmp.ne.s32.totalorder %s65, %s66
      %p80 = scmp.eq.s32.totalorder %s32, 1
      %p81 = por %p79, %p80
      %p83 = scmp.ne.s32.totalorder %s66, %s82
      %p84 = scmp.eq.s32.totalorder %s32, 0
      %p85 = por %p83, %p84
      %s87 = sadd.s32 %s86, 1
      %p90 = scmp.eq.s32.totalorder %s26, 1
      %p91 = scmp.ne.s32.totalorder %s86, %s88
      %p92 = scmp.eq.s32.totalorder %s26, 0
      %p93 = por %p91, %p92
      %p94 = scmp.ne.s32.totalorder %s86, %s88
      %p95 = scmp.eq.s32.totalorder %s31, 1
      %p96 = por %p94, %p95
      %p97 = scmp.ne.s32.totalorder %s88, %s89
      %p98 = scmp.eq.s32.totalorder %s31, 0
      %p99 = por %p97, %p98
      %p100 = scmp.ne.s32.totalorder %s88, %s89
      %p101 = scmp.eq.s32.totalorder %s32, 1
      %p102 = por %p100, %p101
      %p104 = scmp.ne.s32.totalorder %s89, %s103
      %p105 = scmp.eq.s32.totalorder %s32, 0
      %p106 = por %p104, %p105
      %s108 = sadd.s32 %s107, 1
      %p111 = scmp.eq.s32.totalorder %s26, 1
      %p112 = scmp.ne.s32.totalorder %s107, %s109
      %p113 = scmp.eq.s32.totalorder %s26, 0
      %p114 = por %p112, %p113
      %p115 = scmp.ne.s32.totalorder %s107, %s109
      %p116 = scmp.eq.s32.totalorder %s31, 1
      %p117 = por %p115, %p116
      %p118 = scmp.ne.s32.totalorder %s109, %s110
      %p119 = scmp.eq.s32.totalorder %s31, 0
      %p120 = por %p118, %p119
      %p121 = scmp.ne.s32.totalorder %s109, %s110
      %p122 = scmp.eq.s32.totalorder %s32, 1
      %p123 = por %p121, %p122
      %p125 = scmp.ne.s32.totalorder %s110, %s124
      %p126 = scmp.eq.s32.totalorder %s32, 0
      %p127 = por %p125, %p126
      %s129 = sadd.s32 %s128, 1
      %p132 = scmp.eq.s32.totalorder %s26, 1
      %p133 = scmp.ne.s32.totalorder %s128, %s130
      %p134 = scmp.eq.s32.totalorder %s26, 0
      %p135 = por %p133, %p134
      %p136 = scmp.ne.s32.totalorder %s128, %s130
      %p137 = scmp.eq.s32.totalorder %s31, 1
      %p138 = por %p136, %p137
      %p139 = scmp.ne.s32.totalorder %s130, %s131
      %p140 = scmp.eq.s32.totalorder %s31, 0
      %p141 = por %p139, %p140
      %p142 = scmp.ne.s32.totalorder %s130, %s131
      %p143 = scmp.eq.s32.totalorder %s32, 1
      %p144 = por %p142, %p143
      %p146 = scmp.ne.s32.totalorder %s131, %s145
      %p147 = scmp.eq.s32.totalorder %s32, 0
      %p148 = por %p146, %p147
      %s150 = sadd.s32 %s149, 1
      %p153 = scmp.eq.s32.totalorder %s26, 1
      %p154 = scmp.ne.s32.totalorder %s149, %s151
      %p155 = scmp.eq.s32.totalorder %s26, 0
      %p156 = por %p154, %p155
      %p157 = scmp.ne.s32.totalorder %s149, %s151
      %p158 = scmp.eq.s32.totalorder %s31, 1
      %p159 = por %p157, %p158
      %p160 = scmp.ne.s32.totalorder %s151, %s152
      %p161 = scmp.eq.s32.totalorder %s31, 0
      %p162 = por %p160, %p161
      %p163 = scmp.ne.s32.totalorder %s151, %s152
      %p164 = scmp.eq.s32.totalorder %s32, 1
      %p165 = por %p163, %p164
      %p167 = scmp.ne.s32.totalorder %s152, %s166
      %p168 = scmp.eq.s32.totalorder %s32, 0
      %p169 = por %p167, %p168
      %s171 = sadd.s32 %s170, 1
      %p174 = scmp.eq.s32.totalorder %s26, 1
      %p175 = scmp.ne.s32.totalorder %s170, %s172
      %p176 = scmp.eq.s32.totalorder %s26, 0
      %p177 = por %p175, %p176
      %p178 = scmp.ne.s32.totalorder %s170, %s172
      %p179 = scmp.eq.s32.totalorder %s31, 1
      %p180 = por %p178, %p179
      %p181 = scmp.ne.s32.totalorder %s172, %s173
      %p182 = scmp.eq.s32.totalorder %s31, 0
      %p183 = por %p181, %p182
      %p184 = scmp.ne.s32.totalorder %s172, %s173
      %p185 = scmp.eq.s32.totalorder %s32, 1
      %p186 = por %p184, %p185
      %p188 = scmp.ne.s32.totalorder %s173, %s187
      %p189 = scmp.eq.s32.totalorder %s32, 0
      %p190 = por %p188, %p189
      %s192 = sadd.s32 %s191, 1
      %p195 = scmp.eq.s32.totalorder %s26, 1
      %p196 = scmp.ne.s32.totalorder %s191, %s193
      %p197 = scmp.eq.s32.totalorder %s26, 0
      %p198 = por %p196, %p197
      %p199 = scmp.ne.s32.totalorder %s191, %s193
      %p200 = scmp.eq.s32.totalorder %s31, 1
      %p201 = por %p199, %p200
      %p202 = scmp.ne.s32.totalorder %s193, %s194
      %p203 = scmp.eq.s32.totalorder %s31, 0
      %p204 = por %p202, %p203
      %p205 = scmp.ne.s32.totalorder %s193, %s194
      %p206 = scmp.eq.s32.totalorder %s32, 1
      %p207 = por %p205, %p206
      %p209 = scmp.ne.s32.totalorder %s194, %s208
      %p210 = scmp.eq.s32.totalorder %s32, 0
      %p211 = por %p209, %p210
      %s213 = sadd.s32 %s212, 1
      %p216 = scmp.eq.s32.totalorder %s26, 1
      %p217 = scmp.ne.s32.totalorder %s212, %s214
      %p218 = scmp.eq.s32.totalorder %s26, 0
      %p219 = por %p217, %p218
      %p220 = scmp.ne.s32.totalorder %s212, %s214
      %p221 = scmp.eq.s32.totalorder %s31, 1
      %p222 = por %p220, %p221
      %p223 = scmp.ne.s32.totalorder %s214, %s215
      %p224 = scmp.eq.s32.totalorder %s31, 0
      %p225 = por %p223, %p224
      %p226 = scmp.ne.s32.totalorder %s214, %s215
      %p227 = scmp.eq.s32.totalorder %s32, 1
      %p228 = por %p226, %p227
      %p230 = scmp.ne.s32.totalorder %s215, %s229
      %p231 = scmp.eq.s32.totalorder %s32, 0
      %p232 = por %p230, %p231
      %s234 = sadd.s32 %s233, 1
      %p237 = scmp.eq.s32.totalorder %s26, 1
      %p238 = scmp.ne.s32.totalorder %s233, %s235
      %p239 = scmp.eq.s32.totalorder %s26, 0
      %p240 = por %p238, %p239
      %p241 = scmp.ne.s32.totalorder %s233, %s235
      %p242 = scmp.eq.s32.totalorder %s31, 1
      %p243 = por %p241, %p242
      %p244 = scmp.ne.s32.totalorder %s235, %s236
      %p245 = scmp.eq.s32.totalorder %s31, 0
      %p246 = por %p244, %p245
      %p247 = scmp.ne.s32.totalorder %s235, %s236
      %p248 = scmp.eq.s32.totalorder %s32, 1
      %p249 = por %p247, %p248
      %p251 = scmp.ne.s32.totalorder %s236, %s250
      %p252 = scmp.eq.s32.totalorder %s32, 0
      %p253 = por %p251, %p252
      %s255 = sadd.s32 %s254, 1
      %p258 = scmp.eq.s32.totalorder %s26, 1
      %p259 = scmp.ne.s32.totalorder %s254, %s256
      %p260 = scmp.eq.s32.totalorder %s26, 0
      %p261 = por %p259, %p260
      %p262 = scmp.ne.s32.totalorder %s254, %s256
      %p263 = scmp.eq.s32.totalorder %s31, 1
      %p264 = por %p262, %p263
      %p265 = scmp.ne.s32.totalorder %s256, %s257
      %p266 = scmp.eq.s32.totalorder %s31, 0
      %p267 = por %p265, %p266
      %p268 = scmp.ne.s32.totalorder %s256, %s257
      %p269 = scmp.eq.s32.totalorder %s32, 1
      %p270 = por %p268, %p269
      %p272 = scmp.ne.s32.totalorder %s257, %s271
      %p273 = scmp.eq.s32.totalorder %s32, 0
      %p274 = por %p272, %p273
      %s276 = sadd.s32 %s275, 1
      %p279 = scmp.eq.s32.totalorder %s26, 1
      %p280 = scmp.ne.s32.totalorder %s275, %s277
      %p281 = scmp.eq.s32.totalorder %s26, 0
      %p282 = por %p280, %p281
      %p283 = scmp.ne.s32.totalorder %s275, %s277
      %p284 = scmp.eq.s32.totalorder %s31, 1
      %p285 = por %p283, %p284
      %p286 = scmp.ne.s32.totalorder %s277, %s278
      %p287 = scmp.eq.s32.totalorder %s31, 0
      %p288 = por %p286, %p287
      %p289 = scmp.ne.s32.totalorder %s277, %s278
      %p290 = scmp.eq.s32.totalorder %s32, 1
      %p291 = por %p289, %p290
      %p293 = scmp.ne.s32.totalorder %s278, %s292
      %p294 = scmp.eq.s32.totalorder %s32, 0
      %p295 = por %p293, %p294
      %s296 = ssub.s32 %s26, %s33
      %p297 = scmp.eq.s32.totalorder %s296, 0
      %s299 = sadd.s32 %s298, 1
      %s300 = scalar_select %p297, %s298, %s299
      %p303 = pneg %p297
      %p304 = scmp.eq.s32.totalorder %s26, 1
      %p305 = por %p303, %p304
      %p306 = scmp.ne.s32.totalorder %s298, %s301
      %p307 = scmp.eq.s32.totalorder %s26, 0
      %p308 = por %p306, %p307
      %p309 = scmp.ne.s32.totalorder %s298, %s301
      %p310 = scmp.eq.s32.totalorder %s31, 1
      %p311 = por %p309, %p310
      %p312 = scmp.ne.s32.totalorder %s301, %s302
      %p313 = scmp.eq.s32.totalorder %s31, 0
      %p314 = por %p312, %p313
      %p315 = scmp.ne.s32.totalorder %s301, %s302
      %p316 = scmp.eq.s32.totalorder %s32, 1
      %p317 = por %p315, %p316
      %p319 = scmp.ne.s32.totalorder %s302, %s318
      %p320 = scmp.eq.s32.totalorder %s32, 0
      %p321 = por %p319, %p320
      %s322 = ssub.s32 %s26, %s33
      %p323 = scmp.eq.s32.totalorder %s322, 0
      %s325 = sadd.s32 %s324, 1
      %s326 = scalar_select %p323, %s324, %s325
      %p329 = pneg %p323
      %p330 = scmp.eq.s32.totalorder %s26, 1
      %p331 = por %p329, %p330
      %p332 = scmp.ne.s32.totalorder %s324, %s327
      %p333 = scmp.eq.s32.totalorder %s26, 0
      %p334 = por %p332, %p333
      %p335 = scmp.ne.s32.totalorder %s324, %s327
      %p336 = scmp.eq.s32.totalorder %s31, 1
      %p337 = por %p335, %p336
      %p338 = scmp.ne.s32.totalorder %s327, %s328
      %p339 = scmp.eq.s32.totalorder %s31, 0
      %p340 = por %p338, %p339
      %p341 = scmp.ne.s32.totalorder %s327, %s328
      %p342 = scmp.eq.s32.totalorder %s32, 1
      %p343 = por %p341, %p342
      %p345 = scmp.ne.s32.totalorder %s328, %s344
      %p346 = scmp.eq.s32.totalorder %s32, 0
      %p347 = por %p345, %p346
      %p348 = scmp.le.s32.totalorder 1, %s26
      %p349 = scmp.lt.s32.totalorder %s26, 3
      %p350 = pnand %p348, %p349
      %p351 = pneg %p350
      // Predicated region
      $region9: #{tpu_custom_call.1} parent=5 // pred_check
        _
      $region10: #{tpu_custom_call.1} parent=5 // pred_check_branch
        %353 = sbr.rel (%p350) target = $region12
      $region11: #{tpu_custom_call.1} parent=5 // pred_region
        %s354 = ssub.s32 %s26, 1
        // Predicated region
        $region13: #{tpu_custom_call.1} parent=11 // pred_check
          %p355 = pneg %p99
        $region14: #{tpu_custom_call.1} parent=11 // pred_check_branch
          %357 = sbr.rel (%p355) target = $region16
        $region15: #{tpu_custom_call.1} parent=11 // pred_region
          _
        $region16: #{tpu_custom_call.1} parent=11 // pred_fallthru
          _
        // Predicated region
        $region17: #{tpu_custom_call.1} parent=11 // pred_check
          %p358 = pneg %p120
        $region18: #{tpu_custom_call.1} parent=11 // pred_check_branch
          %360 = sbr.rel (%p358) target = $region20
        $region19: #{tpu_custom_call.1} parent=11 // pred_region
          _
        $region20: #{tpu_custom_call.1} parent=11 // pred_fallthru
          _
        // Predicated region
        $region21: #{tpu_custom_call.1} parent=11 // pred_check
          %p361 = pneg %p141
        $region22: #{tpu_custom_call.1} parent=11 // pred_check_branch
          %363 = sbr.rel (%p361) target = $region24
        $region23: #{tpu_custom_call.1} parent=11 // pred_region
          _
        $region24: #{tpu_custom_call.1} parent=11 // pred_fallthru
          _
        // Predicated region
        $region25: #{tpu_custom_call.1} parent=11 // pred_check
          %p364 = pneg %p162
        $region26: #{tpu_custom_call.1} parent=11 // pred_check_branch
          %366 = sbr.rel (%p364) target = $region28
        $region27: #{tpu_custom_call.1} parent=11 // pred_region
          _
        $region28: #{tpu_custom_call.1} parent=11 // pred_fallthru
          _
        // Predicated region
        $region29: #{tpu_custom_call.1} parent=11 // pred_check
          %p367 = pneg %p183
        $region30: #{tpu_custom_call.1} parent=11 // pred_check_branch
          %369 = sbr.rel (%p367) target = $region32
        $region31: #{tpu_custom_call.1} parent=11 // pred_region
          _
        $region32: #{tpu_custom_call.1} parent=11 // pred_fallthru
          _
        // Predicated region
        $region33: #{tpu_custom_call.1} parent=11 // pred_check
          %p370 = pneg %p204
        $region34: #{tpu_custom_call.1} parent=11 // pred_check_branch
          %372 = sbr.rel (%p370) target = $region36
        $region35: #{tpu_custom_call.1} parent=11 // pred_region
          _
        $region36: #{tpu_custom_call.1} parent=11 // pred_fallthru
          _
        // Predicated region
        $region37: #{tpu_custom_call.1} parent=11 // pred_check
          %p373 = pneg %p225
        $region38: #{tpu_custom_call.1} parent=11 // pred_check_branch
          %375 = sbr.rel (%p373) target = $region40
        $region39: #{tpu_custom_call.1} parent=11 // pred_region
          _
        $region40: #{tpu_custom_call.1} parent=11 // pred_fallthru
          _
        // Predicated region
        $region41: #{tpu_custom_call.1} parent=11 // pred_check
          %p376 = pneg %p246
        $region42: #{tpu_custom_call.1} parent=11 // pred_check_branch
          %378 = sbr.rel (%p376) target = $region44
        $region43: #{tpu_custom_call.1} parent=11 // pred_region
          _
        $region44: #{tpu_custom_call.1} parent=11 // pred_fallthru
          _
        // Predicated region
        $region45: #{tpu_custom_call.1} parent=11 // pred_check
          %p379 = pneg %p267
        $region46: #{tpu_custom_call.1} parent=11 // pred_check_branch
          %381 = sbr.rel (%p379) target = $region48
        $region47: #{tpu_custom_call.1} parent=11 // pred_region
          _
        $region48: #{tpu_custom_call.1} parent=11 // pred_fallthru
          _
        // Predicated region
        $region49: #{tpu_custom_call.1} parent=11 // pred_check
          %p382 = pneg %p288
        $region50: #{tpu_custom_call.1} parent=11 // pred_check_branch
          %384 = sbr.rel (%p382) target = $region52
        $region51: #{tpu_custom_call.1} parent=11 // pred_region
          _
        $region52: #{tpu_custom_call.1} parent=11 // pred_fallthru
          _
      $region12: #{tpu_custom_call.1} parent=5 // pred_fallthru
        _
      %p385 = scmp.lt.s32.totalorder %s26, 2
      // Predicated region
      $region53: #{tpu_custom_call.1} parent=5 // pred_check
        %p386 = pneg %p385
      $region54: #{tpu_custom_call.1} parent=5 // pred_check_branch
        %388 = sbr.rel (%p386) target = $region56
      $region55: #{tpu_custom_call.1} parent=5 // pred_region
        // Predicated region
        $region57: #{tpu_custom_call.1} parent=55 // pred_check
          %p389 = pneg %p46
        $region58: #{tpu_custom_call.1} parent=55 // pred_check_branch
          %391 = sbr.rel (%p389) target = $region60
        $region59: #{tpu_custom_call.1} parent=55 // pred_region
          %s392 = smul.u32 4, %s26
          %p393 = scmp.lt.s32.totalorder %s392, 7
          %s394 = scalar_select %p393, %s392, 7
          %s395 = smul.addr %s394, 8
          %s396 = scalar_lea.vmem %s0, %s395
          %s397 = smul.u32 4, %s26
        $region60: #{tpu_custom_call.1} parent=55 // pred_fallthru
          _
        // Predicated region
        $region61: #{tpu_custom_call.1} parent=55 // pred_check
          %p398 = pneg %p72
        $region62: #{tpu_custom_call.1} parent=55 // pred_check_branch
          %400 = sbr.rel (%p398) target = $region64
        $region63: #{tpu_custom_call.1} parent=55 // pred_region
          %s401 = smul.u32 2, %s26
          %p402 = scmp.lt.s32.totalorder %s401, 3
          %s403 = scalar_select %p402, %s401, 3
          %s404 = smul.addr %s403, 8
          %s405 = scalar_lea.vmem %s1, %s404
          %s406 = smul.u32 2, %s26
        $region64: #{tpu_custom_call.1} parent=55 // pred_fallthru
          _
      $region56: #{tpu_custom_call.1} parent=5 // pred_fallthru
        _
      %p407 = scmp.le.s32.totalorder 1, %s26
      %p408 = scmp.lt.s32.totalorder %s26, 3
      %p409 = pnand %p407, %p408
      %p410 = pneg %p409
      // Predicated region
      $region65: #{tpu_custom_call.1} parent=5 // pred_check
        _
      $region66: #{tpu_custom_call.1} parent=5 // pred_check_branch
        %412 = sbr.rel (%p409) target = $region68
      $region67: #{tpu_custom_call.1} parent=5 // pred_region
        %s413 = ssub.s32 %s26, 1
        %s414 = smul.u32 4, %s31
        %p415 = scmp.lt.s32.totalorder %s414, 7
        %s416 = scalar_select %p415, %s414, 7
        %s417 = smul.addr %s416, 8
        %s418 = scalar_lea.vmem %s0, %s417
        %p419 = pneg %p52
        %p420 = pneg %p49
        %s421 = smul.u32 2, %s31
        %p422 = scmp.lt.s32.totalorder %s421, 3
        %s423 = scalar_select %p422, %s421, 3
        %s424 = smul.addr %s423, 8
        %s425 = scalar_lea.vmem %s1, %s424
        %p426 = pneg %p78
        %p427 = pneg %p75
        %p428 = pneg %p99
        %p429 = pneg %p96
        %p430 = pneg %p120
        %p431 = pneg %p117
        %p432 = pneg %p141
        %p433 = pneg %p138
        %p434 = pneg %p162
        %p435 = pneg %p159
        %p436 = pneg %p183
        %p437 = pneg %p180
        %p438 = pneg %p204
        %p439 = pneg %p201
        %p440 = pneg %p225
        %p441 = pneg %p222
        %p442 = pneg %p246
        %p443 = pneg %p243
        %p444 = pneg %p267
        %p445 = pneg %p264
        %p446 = pneg %p288
        %p447 = pneg %p285
        %p448 = pneg %p314
        %p449 = pneg %p311
        %s450 = sand.u32 %s301, 1
        %s451 = scalar_lea.sflag [#allocation3], %s450
        %s452 = sand.u32 %s301, 1
        %s453 = smul.addr %s452, 16
        %s454 = scalar_lea.vmem [#allocation2], %s453
        %p455 = pneg %p340
        %p456 = pneg %p337
        %s457 = sand.u32 %s327, 1
        %s458 = scalar_lea.sflag [#allocation5], %s457
        %s459 = sand.u32 %s327, 1
        %s460 = smul.addr %s459, 8
        %s461 = scalar_lea.vmem [#allocation4], %s460
        %s462 = smul.u32 4, %s31
        %p463 = scmp.lt.s32.totalorder %s462, 7
        %s464 = scalar_select %p463, %s462, 7
        %s465 = smul.addr %s464, 8
        %s466 = scalar_lea.vmem %s0, %s465
        %s467 = smul.u32 4, %s31
        %s468 = smul.u32 2, %s31
        %p469 = scmp.lt.s32.totalorder %s468, 3
        %s470 = scalar_select %p469, %s468, 3
        %s471 = smul.addr %s470, 8
        %s472 = scalar_lea.vmem %s1, %s471
        %s473 = smul.u32 2, %s31
        %s474 = smul.u32 2, %s31
        %v475 = vld [vmem:[%s466] sm:$0xff]
        %v476 = vld [vmem:[%s466 + $0x8] sm:$0xff]
        %v477 = vld [vmem:[%s466 + $0x10] sm:$0xff]
        %v478 = vld [vmem:[%s466 + $0x18] sm:$0xff]
        %v479 = vld [vmem:[%s472] sm:$0xff]
        %v480 = vld [vmem:[%s472 + $0x8] sm:$0xff]
        %v481 = vld [vmem:[%s2] sm:$0xff]
        %v482 = vld [vmem:[%s2 + $0x8] sm:$0xff]
        %v483 = vld [vmem:[%s2 + $0x10] sm:$0xff]
        %v484 = vld [vmem:[%s2 + $0x18] sm:$0xff]
        %v485 = vld [vmem:[%s4] sm:$0x1]
        %v486 = vlaneseq
        %v487 = vshrl.u32 %v486, 7
        %v488 = vsub.s32 0, %v487
        %v489 = vrot.slane %v485, %v488
        %vm490 = vcmask 261120
        %v492 = vsel %vm490, %v475, 0
        %v495 = vsel %vm490, %v476, 0
        %v498 = vsel %vm490, %v477, 0
        %v501 = vsel %vm490, %v478, 0
        %503 = vmatprep.subr.mxu0 0.0
        %504 = vmatpush1.msra.mxu0 0.0
        %505 = vmatprep.subr.mxu0 0.0
        %506 = vmatpush1.msra.mxu0 0.0
        %507 = vmatprep.subr.mxu0 0.0
        %508 = vmatpush1.msra.mxu0 0.0
        %509 = vmatprep.subr.mxu0 0.0
        %510 = vmatpush1.msra.mxu0 0.0
        %511 = vmatprep.subr.mxu0 0.0
        %512 = vmatpush1.msra.mxu0 0.0
        %513 = vmatprep.subr.mxu0 0.0
        %514 = vmatpush1.msra.mxu0 0.0
        %515 = vmatprep.subr.mxu0 0.0
        %516 = vmatpush1.msra.mxu0 0.0
        %517 = vmatprep.subr.mxu0 0.0
        %518 = vmatpush1.msra.mxu0 0.0
        %519 = vmatprep.subr.mxu0 0.0
        %520 = vmatpush1.msra.mxu0 0.0
        %521 = vmatprep.subr.mxu0 0.0
        %522 = vmatpush1.msra.mxu0 0.0
        %523 = vmatprep.subr.mxu0 0.0
        %524 = vmatpush1.msra.mxu0 0.0
        %525 = vmatprep.subr.mxu0 0.0
        %526 = vmatpush1.msra.mxu0 0.0
        %527 = vmatprep.subr.mxu0 0.0
        %528 = vmatpush1.msra.mxu0 %v484
        %529 = vmatprep.subr.mxu0 0.0
        %530 = vmatpush1.msra.mxu0 %v483
        %531 = vmatprep.subr.mxu0 0.0
        %532 = vmatpush1.msra.mxu0 %v482
        %533 = vmatprep.subr.mxu0 0.0
        %534 = vmatpush1.msra.mxu0 %v481
        %535 = vmatprep.subr.mxu0 0.0
        %536 = vmatpush2.msra.mxu0 0.0
        %537 = vmatprep.subr.mxu0 0.0
        %538 = vmatpush2.msra.mxu0 0.0
        %539 = vmatprep.subr.mxu0 0.0
        %540 = vmatpush2.msra.mxu0 0.0
        %541 = vmatprep.subr.mxu0 0.0
        %542 = vmatpush2.msra.mxu0 0.0
        %543 = vmatprep.subr.mxu0 0.0
        %544 = vmatpush2.msra.mxu0 0.0
        %545 = vmatprep.subr.mxu0 0.0
        %546 = vmatpush2.msra.mxu0 0.0
        %547 = vmatprep.subr.mxu0 0.0
        %548 = vmatpush2.msra.mxu0 0.0
        %549 = vmatprep.subr.mxu0 0.0
        %550 = vmatpush2.msra.mxu0 0.0
        %551 = vmatprep.subr.mxu0 0.0
        %552 = vmatpush2.msra.mxu0 0.0
        %553 = vmatprep.subr.mxu0 0.0
        %554 = vmatpush2.msra.mxu0 0.0
        %555 = vmatprep.subr.mxu0 0.0
        %556 = vmatpush2.msra.mxu0 0.0
        %557 = vmatprep.subr.mxu0 0.0
        %558 = vmatpush2.msra.mxu0 0.0
        %559 = vmatprep.subr.mxu0 0.0
        %560 = vmatpush2.msra.mxu0 0.0
        %561 = vmatprep.subr.mxu0 0.0
        %562 = vmatpush2.msra.mxu0 0.0
        %563 = vmatprep.subr.mxu0 0.0
        %564 = vmatpush2.msra.mxu0 0.0
        %565 = vmatprep.subr.mxu0 0.0
        %566 = vmatpush2.msra.mxu0 0.0
        %567 = vmatprep.mubr.f32.mxu0 0.0
        %568 = vmatmul.mubr.f32.gmra.mxu0 %v492
        %v569 = vpop.f32.mrf.mxu0
        %v570 = vadd.f32 %v489, %v569
        %v571 = vpop.f32.mrf.mxu0
        %572 = vmatprep.mubr.f32.mxu0 0.0
        %573 = vmatmul.mubr.f32.gmra.mxu0 %v495
        %v574 = vpop.f32.mrf.mxu0
        %v575 = vadd.f32 %v489, %v574
        %v576 = vpop.f32.mrf.mxu0
        %577 = vmatprep.mubr.f32.mxu0 0.0
        %578 = vmatmul.mubr.f32.gmra.mxu0 %v498
        %v579 = vpop.f32.mrf.mxu0
        %v580 = vadd.f32 %v489, %v579
        %v581 = vpop.f32.mrf.mxu0
        %582 = vmatprep.mubr.f32.mxu0 0.0
        %583 = vmatmul.mubr.f32.gmra.mxu0 %v501
        %v584 = vpop.f32.mrf.mxu0
        %v585 = vadd.f32 %v489, %v584
        %v586 = vpop.f32.mrf.mxu0
        %587 = vdwg.mxu0
        %v588 = vld [vmem:[%s5] sm:$0xff]
        %v589 = vld [vmem:[%s5 + $0x8] sm:$0xff]
        %v590 = vld [vmem:[%s5 + $0x10] sm:$0xff]
        %v591 = vld [vmem:[%s5 + $0x18] sm:$0xff]
        %v592 = vld [vmem:[%s8] sm:$0x1]
        %v593 = vlaneseq
        %v594 = vshrl.u32 %v593, 7
        %v595 = vsub.s32 0, %v594
        %v596 = vrot.slane %v592, %v595
        %597 = vmatprep.subr.mxu0 0.0
        %598 = vmatpush1.msra.mxu0 0.0
        %599 = vmatprep.subr.mxu0 0.0
        %600 = vmatpush1.msra.mxu0 0.0
        %601 = vmatprep.subr.mxu0 0.0
        %602 = vmatpush1.msra.mxu0 0.0
        %603 = vmatprep.subr.mxu0 0.0
        %604 = vmatpush1.msra.mxu0 0.0
        %605 = vmatprep.subr.mxu0 0.0
        %606 = vmatpush1.msra.mxu0 0.0
        %607 = vmatprep.subr.mxu0 0.0
        %608 = vmatpush1.msra.mxu0 0.0
        %609 = vmatprep.subr.mxu0 0.0
        %610 = vmatpush1.msra.mxu0 0.0
        %611 = vmatprep.subr.mxu0 0.0
        %612 = vmatpush1.msra.mxu0 0.0
        %613 = vmatprep.subr.mxu0 0.0
        %614 = vmatpush1.msra.mxu0 0.0
        %615 = vmatprep.subr.mxu0 0.0
        %616 = vmatpush1.msra.mxu0 0.0
        %617 = vmatprep.subr.mxu0 0.0
        %618 = vmatpush1.msra.mxu0 0.0
        %619 = vmatprep.subr.mxu0 0.0
        %620 = vmatpush1.msra.mxu0 0.0
        %621 = vmatprep.subr.mxu0 0.0
        %622 = vmatpush1.msra.mxu0 %v591
        %623 = vmatprep.subr.mxu0 0.0
        %624 = vmatpush1.msra.mxu0 %v590
        %625 = vmatprep.subr.mxu0 0.0
        %626 = vmatpush1.msra.mxu0 %v589
        %627 = vmatprep.subr.mxu0 0.0
        %628 = vmatpush1.msra.mxu0 %v588
        %629 = vmatprep.subr.mxu0 0.0
        %630 = vmatpush2.msra.mxu0 0.0
        %631 = vmatprep.subr.mxu0 0.0
        %632 = vmatpush2.msra.mxu0 0.0
        %633 = vmatprep.subr.mxu0 0.0
        %634 = vmatpush2.msra.mxu0 0.0
        %635 = vmatprep.subr.mxu0 0.0
        %636 = vmatpush2.msra.mxu0 0.0
        %637 = vmatprep.subr.mxu0 0.0
        %638 = vmatpush2.msra.mxu0 0.0
        %639 = vmatprep.subr.mxu0 0.0
        %640 = vmatpush2.msra.mxu0 0.0
        %641 = vmatprep.subr.mxu0 0.0
        %642 = vmatpush2.msra.mxu0 0.0
        %643 = vmatprep.subr.mxu0 0.0
        %644 = vmatpush2.msra.mxu0 0.0
        %645 = vmatprep.subr.mxu0 0.0
        %646 = vmatpush2.msra.mxu0 0.0
        %647 = vmatprep.subr.mxu0 0.0
        %648 = vmatpush2.msra.mxu0 0.0
        %649 = vmatprep.subr.mxu0 0.0
        %650 = vmatpush2.msra.mxu0 0.0
        %651 = vmatprep.subr.mxu0 0.0
        %652 = vmatpush2.msra.mxu0 0.0
        %653 = vmatprep.subr.mxu0 0.0
        %654 = vmatpush2.msra.mxu0 0.0
        %655 = vmatprep.subr.mxu0 0.0
        %656 = vmatpush2.msra.mxu0 0.0
        %657 = vmatprep.subr.mxu0 0.0
        %658 = vmatpush2.msra.mxu0 0.0
        %659 = vmatprep.subr.mxu0 0.0
        %660 = vmatpush2.msra.mxu0 0.0
        %661 = vmatprep.mubr.f32.mxu0 0.0
        %662 = vmatmul.mubr.f32.gmra.mxu0 %v492
        %v663 = vpop.f32.mrf.mxu0
        %v664 = vadd.f32 %v596, %v663
        %v665 = vpop.f32.mrf.mxu0
        %666 = vmatprep.mubr.f32.mxu0 0.0
        %667 = vmatmul.mubr.f32.gmra.mxu0 %v495
        %v668 = vpop.f32.mrf.mxu0
        %v669 = vadd.f32 %v596, %v668
        %v670 = vpop.f32.mrf.mxu0
        %671 = vmatprep.mubr.f32.mxu0 0.0
        %672 = vmatmul.mubr.f32.gmra.mxu0 %v498
        %v673 = vpop.f32.mrf.mxu0
        %v674 = vadd.f32 %v596, %v673
        %v675 = vpop.f32.mrf.mxu0
        %676 = vmatprep.mubr.f32.mxu0 0.0
        %677 = vmatmul.mubr.f32.gmra.mxu0 %v501
        %v678 = vpop.f32.mrf.mxu0
        %v679 = vadd.f32 %v596, %v678
        %v680 = vpop.f32.mrf.mxu0
        %681 = vdwg.mxu0
        %v682 = vld [vmem:[%s3] sm:$0xff]
        %v683 = vld [vmem:[%s3 + $0x8] sm:$0xff]
        %v684 = vld [vmem:[%s3 + $0x10] sm:$0xff]
        %v685 = vld [vmem:[%s3 + $0x18] sm:$0xff]
        %v686 = vld [vmem:[%s3 + $0x20] sm:$0xff]
        %v687 = vld [vmem:[%s3 + $0x28] sm:$0xff]
        %v688 = vld [vmem:[%s3 + $0x30] sm:$0xff]
        %v689 = vld [vmem:[%s3 + $0x38] sm:$0xff]
        %v690 = vld [vmem:[%s4 + $0x1] sm:$0x1]
        %v691 = vlaneseq
        %v692 = vshrl.u32 %v691, 7
        %v693 = vsub.s32 0, %v692
        %v694 = vrot.slane %v690, %v693
        %vm695 = vcmask 523264
        %v697 = vsel %vm695, %v479, 0
        %v700 = vsel %vm695, %v480, 0
        %702 = vmatprep.subr.mxu0 0.0
        %703 = vmatpush1.msra.mxu0 0.0
        %704 = vmatprep.subr.mxu0 0.0
        %705 = vmatpush1.msra.mxu0 0.0
        %706 = vmatprep.subr.mxu0 0.0
        %707 = vmatpush1.msra.mxu0 0.0
        %708 = vmatprep.subr.mxu0 0.0
        %709 = vmatpush1.msra.mxu0 0.0
        %710 = vmatprep.subr.mxu0 0.0
        %711 = vmatpush1.msra.mxu0 0.0
        %712 = vmatprep.subr.mxu0 0.0
        %713 = vmatpush1.msra.mxu0 0.0
        %714 = vmatprep.subr.mxu0 0.0
        %715 = vmatpush1.msra.mxu0 0.0
        %716 = vmatprep.subr.mxu0 0.0
        %717 = vmatpush1.msra.mxu0 0.0
        %718 = vmatprep.subr.mxu0 0.0
        %719 = vmatpush1.msra.mxu0 %v689
        %720 = vmatprep.subr.mxu0 0.0
        %721 = vmatpush1.msra.mxu0 %v688
        %722 = vmatprep.subr.mxu0 0.0
        %723 = vmatpush1.msra.mxu0 %v687
        %724 = vmatprep.subr.mxu0 0.0
        %725 = vmatpush1.msra.mxu0 %v686
        %726 = vmatprep.subr.mxu0 0.0
        %727 = vmatpush1.msra.mxu0 %v685
        %728 = vmatprep.subr.mxu0 0.0
        %729 = vmatpush1.msra.mxu0 %v684
        %730 = vmatprep.subr.mxu0 0.0
        %731 = vmatpush1.msra.mxu0 %v683
        %732 = vmatprep.subr.mxu0 0.0
        %733 = vmatpush1.msra.mxu0 %v682
        %734 = vmatprep.subr.mxu0 0.0
        %735 = vmatpush2.msra.mxu0 0.0
        %736 = vmatprep.subr.mxu0 0.0
        %737 = vmatpush2.msra.mxu0 0.0
        %738 = vmatprep.subr.mxu0 0.0
        %739 = vmatpush2.msra.mxu0 0.0
        %740 = vmatprep.subr.mxu0 0.0
        %741 = vmatpush2.msra.mxu0 0.0
        %742 = vmatprep.subr.mxu0 0.0
        %743 = vmatpush2.msra.mxu0 0.0
        %744 = vmatprep.subr.mxu0 0.0
        %745 = vmatpush2.msra.mxu0 0.0
        %746 = vmatprep.subr.mxu0 0.0
        %747 = vmatpush2.msra.mxu0 0.0
        %748 = vmatprep.subr.mxu0 0.0
        %749 = vmatpush2.msra.mxu0 0.0
        %750 = vmatprep.subr.mxu0 0.0
        %751 = vmatpush2.msra.mxu0 0.0
        %752 = vmatprep.subr.mxu0 0.0
        %753 = vmatpush2.msra.mxu0 0.0
        %754 = vmatprep.subr.mxu0 0.0
        %755 = vmatpush2.msra.mxu0 0.0
        %756 = vmatprep.subr.mxu0 0.0
        %757 = vmatpush2.msra.mxu0 0.0
        %758 = vmatprep.subr.mxu0 0.0
        %759 = vmatpush2.msra.mxu0 0.0
        %760 = vmatprep.subr.mxu0 0.0
        %761 = vmatpush2.msra.mxu0 0.0
        %762 = vmatprep.subr.mxu0 0.0
        %763 = vmatpush2.msra.mxu0 0.0
        %764 = vmatprep.subr.mxu0 0.0
        %765 = vmatpush2.msra.mxu0 0.0
        %766 = vmatprep.mubr.f32.mxu0 0.0
        %767 = vmatmul.mubr.f32.gmra.mxu0 %v697
        %v768 = vpop.f32.mrf.mxu0
        %v769 = vadd.f32 %v694, %v768
        %v770 = vpop.f32.mrf.mxu0
        %771 = vmatprep.mubr.f32.mxu0 0.0
        %772 = vmatmul.mubr.f32.gmra.mxu0 %v700
        %v773 = vpop.f32.mrf.mxu0
        %v774 = vadd.f32 %v694, %v773
        %v775 = vpop.f32.mrf.mxu0
        %776 = vdwg.mxu0
        %v778 = vsel %vm490, %v769, 0
        %v781 = vsel %vm490, %v570, 0
        %v784 = vsel %vm490, %v575, 0
        %786 = vmatprep.subr.mxu0 0.0
        %787 = vmatpush1.xpose.msra.mxu0 0.0
        %788 = vmatprep.subr.mxu0 0.0
        %789 = vmatpush1.xpose.msra.mxu0 0.0
        %790 = vmatprep.subr.mxu0 0.0
        %791 = vmatpush1.xpose.msra.mxu0 0.0
        %792 = vmatprep.subr.mxu0 0.0
        %793 = vmatpush1.xpose.msra.mxu0 0.0
        %794 = vmatprep.subr.mxu0 0.0
        %795 = vmatpush1.xpose.msra.mxu0 0.0
        %796 = vmatprep.subr.mxu0 0.0
        %797 = vmatpush1.xpose.msra.mxu0 0.0
        %798 = vmatprep.subr.mxu0 0.0
        %799 = vmatpush1.xpose.msra.mxu0 0.0
        %800 = vmatprep.subr.mxu0 0.0
        %801 = vmatpush1.xpose.msra.mxu0 0.0
        %802 = vmatprep.subr.mxu0 0.0
        %803 = vmatpush1.xpose.msra.mxu0 0.0
        %804 = vmatprep.subr.mxu0 0.0
        %805 = vmatpush1.xpose.msra.mxu0 0.0
        %806 = vmatprep.subr.mxu0 0.0
        %807 = vmatpush1.xpose.msra.mxu0 0.0
        %808 = vmatprep.subr.mxu0 0.0
        %809 = vmatpush1.xpose.msra.mxu0 0.0
        %810 = vmatprep.subr.mxu0 0.0
        %811 = vmatpush1.xpose.msra.mxu0 0.0
        %812 = vmatprep.subr.mxu0 0.0
        %813 = vmatpush1.xpose.msra.mxu0 0.0
        %814 = vmatprep.subr.mxu0 0.0
        %815 = vmatpush1.xpose.msra.mxu0 %v784
        %816 = vmatprep.subr.mxu0 0.0
        %817 = vmatpush1.xpose.msra.mxu0 %v781
        %818 = vmatprep.subr.mxu0 0.0
        %819 = vmatpush2.xpose.msra.mxu0 0.0
        %820 = vmatprep.subr.mxu0 0.0
        %821 = vmatpush2.xpose.msra.mxu0 0.0
        %822 = vmatprep.subr.mxu0 0.0
        %823 = vmatpush2.xpose.msra.mxu0 0.0
        %824 = vmatprep.subr.mxu0 0.0
        %825 = vmatpush2.xpose.msra.mxu0 0.0
        %826 = vmatprep.subr.mxu0 0.0
        %827 = vmatpush2.xpose.msra.mxu0 0.0
        %828 = vmatprep.subr.mxu0 0.0
        %829 = vmatpush2.xpose.msra.mxu0 0.0
        %830 = vmatprep.subr.mxu0 0.0
        %831 = vmatpush2.xpose.msra.mxu0 0.0
        %832 = vmatprep.subr.mxu0 0.0
        %833 = vmatpush2.xpose.msra.mxu0 0.0
        %834 = vmatprep.subr.mxu0 0.0
        %835 = vmatpush2.xpose.msra.mxu0 0.0
        %836 = vmatprep.subr.mxu0 0.0
        %837 = vmatpush2.xpose.msra.mxu0 0.0
        %838 = vmatprep.subr.mxu0 0.0
        %839 = vmatpush2.xpose.msra.mxu0 0.0
        %840 = vmatprep.subr.mxu0 0.0
        %841 = vmatpush2.xpose.msra.mxu0 0.0
        %842 = vmatprep.subr.mxu0 0.0
        %843 = vmatpush2.xpose.msra.mxu0 0.0
        %844 = vmatprep.subr.mxu0 0.0
        %845 = vmatpush2.xpose.msra.mxu0 0.0
        %846 = vmatprep.subr.mxu0 0.0
        %847 = vmatpush2.xpose.msra.mxu0 0.0
        %848 = vmatprep.subr.mxu0 0.0
        %849 = vmatpush2.xpose.msra.mxu0 0.0
        %850 = vmatprep.mubr.f32.mxu0 0.0
        %851 = vmatmul.mubr.f32.gmra.mxu0 %v778
        %v852 = vpop.f32.mrf.mxu0
        %v853 = vadd.f32 0.0, %v852
        %v854 = vpop.f32.mrf.mxu0
        %855 = vdwg.mxu0
        %v856 = vmul.f32 %v853, 0.2236068
        %vm857 = vcmask 130048
        %v859 = vsel %vm857, %v856, 0
        %861 = vmatprep.subr.mxu0 0.0
        %862 = vmatpush1.msra.mxu0 0.0
        %863 = vmatprep.subr.mxu0 0.0
        %864 = vmatpush1.msra.mxu0 0.0
        %865 = vmatprep.subr.mxu0 0.0
        %866 = vmatpush1.msra.mxu0 0.0
        %867 = vmatprep.subr.mxu0 0.0
        %868 = vmatpush1.msra.mxu0 0.0
        %869 = vmatprep.subr.mxu0 0.0
        %870 = vmatpush1.msra.mxu0 0.0
        %871 = vmatprep.subr.mxu0 0.0
        %872 = vmatpush1.msra.mxu0 0.0
        %873 = vmatprep.subr.mxu0 0.0
        %874 = vmatpush1.msra.mxu0 0.0
        %875 = vmatprep.subr.mxu0 0.0
        %876 = vmatpush1.msra.mxu0 0.0
        %877 = vmatprep.subr.mxu0 0.0
        %878 = vmatpush1.msra.mxu0 0.0
        %879 = vmatprep.subr.mxu0 0.0
        %880 = vmatpush1.msra.mxu0 0.0
        %881 = vmatprep.subr.mxu0 0.0
        %882 = vmatpush1.msra.mxu0 0.0
        %883 = vmatprep.subr.mxu0 0.0
        %884 = vmatpush1.msra.mxu0 0.0
        %885 = vmatprep.subr.mxu0 0.0
        %886 = vmatpush1.msra.mxu0 0.0
        %887 = vmatprep.subr.mxu0 0.0
        %888 = vmatpush1.msra.mxu0 0.0
        %889 = vmatprep.subr.mxu0 0.0
        %890 = vmatpush1.msra.mxu0 %v669
        %891 = vmatprep.subr.mxu0 0.0
        %892 = vmatpush1.msra.mxu0 %v664
        %893 = vmatprep.subr.mxu0 0.0
        %894 = vmatpush2.msra.mxu0 0.0
        %895 = vmatprep.subr.mxu0 0.0
        %896 = vmatpush2.msra.mxu0 0.0
        %897 = vmatprep.subr.mxu0 0.0
        %898 = vmatpush2.msra.mxu0 0.0
        %899 = vmatprep.subr.mxu0 0.0
        %900 = vmatpush2.msra.mxu0 0.0
        %901 = vmatprep.subr.mxu0 0.0
        %902 = vmatpush2.msra.mxu0 0.0
        %903 = vmatprep.subr.mxu0 0.0
        %904 = vmatpush2.msra.mxu0 0.0
        %905 = vmatprep.subr.mxu0 0.0
        %906 = vmatpush2.msra.mxu0 0.0
        %907 = vmatprep.subr.mxu0 0.0
        %908 = vmatpush2.msra.mxu0 0.0
        %909 = vmatprep.subr.mxu0 0.0
        %910 = vmatpush2.msra.mxu0 0.0
        %911 = vmatprep.subr.mxu0 0.0
        %912 = vmatpush2.msra.mxu0 0.0
        %913 = vmatprep.subr.mxu0 0.0
        %914 = vmatpush2.msra.mxu0 0.0
        %915 = vmatprep.subr.mxu0 0.0
        %916 = vmatpush2.msra.mxu0 0.0
        %917 = vmatprep.subr.mxu0 0.0
        %918 = vmatpush2.msra.mxu0 0.0
        %919 = vmatprep.subr.mxu0 0.0
        %920 = vmatpush2.msra.mxu0 0.0
        %921 = vmatprep.subr.mxu0 0.0
        %922 = vmatpush2.msra.mxu0 0.0
        %923 = vmatprep.subr.mxu0 0.0
        %924 = vmatpush2.msra.mxu0 0.0
        %925 = vmatprep.mubr.f32.mxu0 0.0
        %926 = vmatmul.mubr.f32.gmra.mxu0 %v859
        %v927 = vpop.f32.mrf.mxu0
        %v928 = vadd.f32 0.0, %v927
        %v929 = vpop.f32.mrf.mxu0
        %930 = vdwg.mxu0
        %v932 = vsel %vm490, %v774, 0
        %v935 = vsel %vm490, %v580, 0
        %v938 = vsel %vm490, %v585, 0
        %940 = vmatprep.subr.mxu0 0.0
        %941 = vmatpush1.xpose.msra.mxu0 0.0
        %942 = vmatprep.subr.mxu0 0.0
        %943 = vmatpush1.xpose.msra.mxu0 0.0
        %944 = vmatprep.subr.mxu0 0.0
        %945 = vmatpush1.xpose.msra.mxu0 0.0
        %946 = vmatprep.subr.mxu0 0.0
        %947 = vmatpush1.xpose.msra.mxu0 0.0
        %948 = vmatprep.subr.mxu0 0.0
        %949 = vmatpush1.xpose.msra.mxu0 0.0
        %950 = vmatprep.subr.mxu0 0.0
        %951 = vmatpush1.xpose.msra.mxu0 0.0
        %952 = vmatprep.subr.mxu0 0.0
        %953 = vmatpush1.xpose.msra.mxu0 0.0
        %954 = vmatprep.subr.mxu0 0.0
        %955 = vmatpush1.xpose.msra.mxu0 0.0
        %956 = vmatprep.subr.mxu0 0.0
        %957 = vmatpush1.xpose.msra.mxu0 0.0
        %958 = vmatprep.subr.mxu0 0.0
        %959 = vmatpush1.xpose.msra.mxu0 0.0
        %960 = vmatprep.subr.mxu0 0.0
        %961 = vmatpush1.xpose.msra.mxu0 0.0
        %962 = vmatprep.subr.mxu0 0.0
        %963 = vmatpush1.xpose.msra.mxu0 0.0
        %964 = vmatprep.subr.mxu0 0.0
        %965 = vmatpush1.xpose.msra.mxu0 0.0
        %966 = vmatprep.subr.mxu0 0.0
        %967 = vmatpush1.xpose.msra.mxu0 0.0
        %968 = vmatprep.subr.mxu0 0.0
        %969 = vmatpush1.xpose.msra.mxu0 %v938
        %970 = vmatprep.subr.mxu0 0.0
        %971 = vmatpush1.xpose.msra.mxu0 %v935
        %972 = vmatprep.subr.mxu0 0.0
        %973 = vmatpush2.xpose.msra.mxu0 0.0
        %974 = vmatprep.subr.mxu0 0.0
        %975 = vmatpush2.xpose.msra.mxu0 0.0
        %976 = vmatprep.subr.mxu0 0.0
        %977 = vmatpush2.xpose.msra.mxu0 0.0
        %978 = vmatprep.subr.mxu0 0.0
        %979 = vmatpush2.xpose.msra.mxu0 0.0
        %980 = vmatprep.subr.mxu0 0.0
        %981 = vmatpush2.xpose.msra.mxu0 0.0
        %982 = vmatprep.subr.mxu0 0.0
        %983 = vmatpush2.xpose.msra.mxu0 0.0
        %984 = vmatprep.subr.mxu0 0.0
        %985 = vmatpush2.xpose.msra.mxu0 0.0
        %986 = vmatprep.subr.mxu0 0.0
        %987 = vmatpush2.xpose.msra.mxu0 0.0
        %988 = vmatprep.subr.mxu0 0.0
        %989 = vmatpush2.xpose.msra.mxu0 0.0
        %990 = vmatprep.subr.mxu0 0.0
        %991 = vmatpush2.xpose.msra.mxu0 0.0
        %992 = vmatprep.subr.mxu0 0.0
        %993 = vmatpush2.xpose.msra.mxu0 0.0
        %994 = vmatprep.subr.mxu0 0.0
        %995 = vmatpush2.xpose.msra.mxu0 0.0
        %996 = vmatprep.subr.mxu0 0.0
        %997 = vmatpush2.xpose.msra.mxu0 0.0
        %998 = vmatprep.subr.mxu0 0.0
        %999 = vmatpush2.xpose.msra.mxu0 0.0
        %1000 = vmatprep.subr.mxu0 0.0
        %1001 = vmatpush2.xpose.msra.mxu0 0.0
        %1002 = vmatprep.subr.mxu0 0.0
        %1003 = vmatpush2.xpose.msra.mxu0 0.0
        %1004 = vmatprep.mubr.f32.mxu0 0.0
        %1005 = vmatmul.mubr.f32.gmra.mxu0 %v932
        %v1006 = vpop.f32.mrf.mxu0
        %v1007 = vadd.f32 0.0, %v1006
        %v1008 = vpop.f32.mrf.mxu0
        %1009 = vdwg.mxu0
        %v1010 = vmul.f32 %v1007, 0.2236068
        %v1012 = vsel %vm857, %v1010, 0
        %1014 = vmatprep.subr.mxu0 0.0
        %1015 = vmatpush1.msra.mxu0 0.0
        %1016 = vmatprep.subr.mxu0 0.0
        %1017 = vmatpush1.msra.mxu0 0.0
        %1018 = vmatprep.subr.mxu0 0.0
        %1019 = vmatpush1.msra.mxu0 0.0
        %1020 = vmatprep.subr.mxu0 0.0
        %1021 = vmatpush1.msra.mxu0 0.0
        %1022 = vmatprep.subr.mxu0 0.0
        %1023 = vmatpush1.msra.mxu0 0.0
        %1024 = vmatprep.subr.mxu0 0.0
        %1025 = vmatpush1.msra.mxu0 0.0
        %1026 = vmatprep.subr.mxu0 0.0
        %1027 = vmatpush1.msra.mxu0 0.0
        %1028 = vmatprep.subr.mxu0 0.0
        %1029 = vmatpush1.msra.mxu0 0.0
        %1030 = vmatprep.subr.mxu0 0.0
        %1031 = vmatpush1.msra.mxu0 0.0
        %1032 = vmatprep.subr.mxu0 0.0
        %1033 = vmatpush1.msra.mxu0 0.0
        %1034 = vmatprep.subr.mxu0 0.0
        %1035 = vmatpush1.msra.mxu0 0.0
        %1036 = vmatprep.subr.mxu0 0.0
        %1037 = vmatpush1.msra.mxu0 0.0
        %1038 = vmatprep.subr.mxu0 0.0
        %1039 = vmatpush1.msra.mxu0 0.0
        %1040 = vmatprep.subr.mxu0 0.0
        %1041 = vmatpush1.msra.mxu0 0.0
        %1042 = vmatprep.subr.mxu0 0.0
        %1043 = vmatpush1.msra.mxu0 %v679
        %1044 = vmatprep.subr.mxu0 0.0
        %1045 = vmatpush1.msra.mxu0 %v674
        %1046 = vmatprep.subr.mxu0 0.0
        %1047 = vmatpush2.msra.mxu0 0.0
        %1048 = vmatprep.subr.mxu0 0.0
        %1049 = vmatpush2.msra.mxu0 0.0
        %1050 = vmatprep.subr.mxu0 0.0
        %1051 = vmatpush2.msra.mxu0 0.0
        %1052 = vmatprep.subr.mxu0 0.0
        %1053 = vmatpush2.msra.mxu0 0.0
        %1054 = vmatprep.subr.mxu0 0.0
        %1055 = vmatpush2.msra.mxu0 0.0
        %1056 = vmatprep.subr.mxu0 0.0
        %1057 = vmatpush2.msra.mxu0 0.0
        %1058 = vmatprep.subr.mxu0 0.0
        %1059 = vmatpush2.msra.mxu0 0.0
        %1060 = vmatprep.subr.mxu0 0.0
        %1061 = vmatpush2.msra.mxu0 0.0
        %1062 = vmatprep.subr.mxu0 0.0
        %1063 = vmatpush2.msra.mxu0 0.0
        %1064 = vmatprep.subr.mxu0 0.0
        %1065 = vmatpush2.msra.mxu0 0.0
        %1066 = vmatprep.subr.mxu0 0.0
        %1067 = vmatpush2.msra.mxu0 0.0
        %1068 = vmatprep.subr.mxu0 0.0
        %1069 = vmatpush2.msra.mxu0 0.0
        %1070 = vmatprep.subr.mxu0 0.0
        %1071 = vmatpush2.msra.mxu0 0.0
        %1072 = vmatprep.subr.mxu0 0.0
        %1073 = vmatpush2.msra.mxu0 0.0
        %1074 = vmatprep.subr.mxu0 0.0
        %1075 = vmatpush2.msra.mxu0 0.0
        %1076 = vmatprep.subr.mxu0 0.0
        %1077 = vmatpush2.msra.mxu0 0.0
        %1078 = vmatprep.mubr.f32.mxu0 0.0
        %1079 = vmatmul.mubr.f32.gmra.mxu0 %v1012
        %v1080 = vpop.f32.mrf.mxu0
        %v1081 = vadd.f32 0.0, %v1080
        %v1082 = vpop.f32.mrf.mxu0
        %1083 = vdwg.mxu0
        %1084 = vrot.lane.b32.xlu0 %v1010, 16
        %v1085 = vpop.permute.xlu0 %1084
        %v1087 = vsel %vm857, %v856, %v1085
        %v1088 = vmax.f32 %v1087, 0.0
        %1089 = vst.msk [vmem:[%s461] sm:$0xff] %vm490, %v1088
        %v1090 = vld [vmem:[%s6] sm:$0xff]
        %v1091 = vld [vmem:[%s6 + $0x8] sm:$0xff]
        %v1092 = vld [vmem:[%s6 + $0x10] sm:$0xff]
        %v1093 = vld [vmem:[%s6 + $0x18] sm:$0xff]
        %v1095 = vsel %vm490, %v928, 0
        %v1098 = vsel %vm490, %v1081, 0
        %1100 = vmatprep.subr.mxu0 0.0
        %1101 = vmatpush1.msra.mxu0 0.0
        %1102 = vmatprep.subr.mxu0 0.0
        %1103 = vmatpush1.msra.mxu0 0.0
        %1104 = vmatprep.subr.mxu0 0.0
        %1105 = vmatpush1.msra.mxu0 0.0
        %1106 = vmatprep.subr.mxu0 0.0
        %1107 = vmatpush1.msra.mxu0 0.0
        %1108 = vmatprep.subr.mxu0 0.0
        %1109 = vmatpush1.msra.mxu0 0.0
        %1110 = vmatprep.subr.mxu0 0.0
        %1111 = vmatpush1.msra.mxu0 0.0
        %1112 = vmatprep.subr.mxu0 0.0
        %1113 = vmatpush1.msra.mxu0 0.0
        %1114 = vmatprep.subr.mxu0 0.0
        %1115 = vmatpush1.msra.mxu0 0.0
        %1116 = vmatprep.subr.mxu0 0.0
        %1117 = vmatpush1.msra.mxu0 0.0
        %1118 = vmatprep.subr.mxu0 0.0
        %1119 = vmatpush1.msra.mxu0 0.0
        %1120 = vmatprep.subr.mxu0 0.0
        %1121 = vmatpush1.msra.mxu0 0.0
        %1122 = vmatprep.subr.mxu0 0.0
        %1123 = vmatpush1.msra.mxu0 0.0
        %1124 = vmatprep.subr.mxu0 0.0
        %1125 = vmatpush1.msra.mxu0 %v1093
        %1126 = vmatprep.subr.mxu0 0.0
        %1127 = vmatpush1.msra.mxu0 %v1092
        %1128 = vmatprep.subr.mxu0 0.0
        %1129 = vmatpush1.msra.mxu0 %v1091
        %1130 = vmatprep.subr.mxu0 0.0
        %1131 = vmatpush1.msra.mxu0 %v1090
        %1132 = vmatprep.subr.mxu0 0.0
        %1133 = vmatpush2.msra.mxu0 0.0
        %1134 = vmatprep.subr.mxu0 0.0
        %1135 = vmatpush2.msra.mxu0 0.0
        %1136 = vmatprep.subr.mxu0 0.0
        %1137 = vmatpush2.msra.mxu0 0.0
        %1138 = vmatprep.subr.mxu0 0.0
        %1139 = vmatpush2.msra.mxu0 0.0
        %1140 = vmatprep.subr.mxu0 0.0
        %1141 = vmatpush2.msra.mxu0 0.0
        %1142 = vmatprep.subr.mxu0 0.0
        %1143 = vmatpush2.msra.mxu0 0.0
        %1144 = vmatprep.subr.mxu0 0.0
        %1145 = vmatpush2.msra.mxu0 0.0
        %1146 = vmatprep.subr.mxu0 0.0
        %1147 = vmatpush2.msra.mxu0 0.0
        %1148 = vmatprep.subr.mxu0 0.0
        %1149 = vmatpush2.msra.mxu0 0.0
        %1150 = vmatprep.subr.mxu0 0.0
        %1151 = vmatpush2.msra.mxu0 0.0
        %1152 = vmatprep.subr.mxu0 0.0
        %1153 = vmatpush2.msra.mxu0 0.0
        %1154 = vmatprep.subr.mxu0 0.0
        %1155 = vmatpush2.msra.mxu0 0.0
        %1156 = vmatprep.subr.mxu0 0.0
        %1157 = vmatpush2.msra.mxu0 0.0
        %1158 = vmatprep.subr.mxu0 0.0
        %1159 = vmatpush2.msra.mxu0 0.0
        %1160 = vmatprep.subr.mxu0 0.0
        %1161 = vmatpush2.msra.mxu0 0.0
        %1162 = vmatprep.subr.mxu0 0.0
        %1163 = vmatpush2.msra.mxu0 0.0
        %1164 = vmatprep.mubr.f32.mxu0 0.0
        %1165 = vmatmul.mubr.f32.gmra.mxu0 %v1095
        %v1166 = vpop.f32.mrf.mxu0
        %v1167 = vadd.f32 0.0, %v1166
        %v1168 = vpop.f32.mrf.mxu0
        %1169 = vmatprep.mubr.f32.mxu0 0.0
        %1170 = vmatmul.mubr.f32.gmra.mxu0 %v1098
        %v1171 = vpop.f32.mrf.mxu0
        %v1172 = vadd.f32 0.0, %v1171
        %v1173 = vpop.f32.mrf.mxu0
        %1174 = vdwg.mxu0
        %v1175 = vld [vmem:[%s7] sm:$0xff]
        %v1176 = vld [vmem:[%s7 + $0x8] sm:$0xff]
        %v1177 = vld [vmem:[%s7 + $0x10] sm:$0xff]
        %v1178 = vld [vmem:[%s7 + $0x18] sm:$0xff]
        %v1179 = vsel %vm490, %v479, 0
        %v1181 = vsel %vm490, %v480, 0
        %1183 = vmatprep.subr.mxu0 0.0
        %1184 = vmatpush1.msra.mxu0 0.0
        %1185 = vmatprep.subr.mxu0 0.0
        %1186 = vmatpush1.msra.mxu0 0.0
        %1187 = vmatprep.subr.mxu0 0.0
        %1188 = vmatpush1.msra.mxu0 0.0
        %1189 = vmatprep.subr.mxu0 0.0
        %1190 = vmatpush1.msra.mxu0 0.0
        %1191 = vmatprep.subr.mxu0 0.0
        %1192 = vmatpush1.msra.mxu0 0.0
        %1193 = vmatprep.subr.mxu0 0.0
        %1194 = vmatpush1.msra.mxu0 0.0
        %1195 = vmatprep.subr.mxu0 0.0
        %1196 = vmatpush1.msra.mxu0 0.0
        %1197 = vmatprep.subr.mxu0 0.0
        %1198 = vmatpush1.msra.mxu0 0.0
        %1199 = vmatprep.subr.mxu0 0.0
        %1200 = vmatpush1.msra.mxu0 0.0
        %1201 = vmatprep.subr.mxu0 0.0
        %1202 = vmatpush1.msra.mxu0 0.0
        %1203 = vmatprep.subr.mxu0 0.0
        %1204 = vmatpush1.msra.mxu0 0.0
        %1205 = vmatprep.subr.mxu0 0.0
        %1206 = vmatpush1.msra.mxu0 0.0
        %1207 = vmatprep.subr.mxu0 0.0
        %1208 = vmatpush1.msra.mxu0 %v1178
        %1209 = vmatprep.subr.mxu0 0.0
        %1210 = vmatpush1.msra.mxu0 %v1177
        %1211 = vmatprep.subr.mxu0 0.0
        %1212 = vmatpush1.msra.mxu0 %v1176
        %1213 = vmatprep.subr.mxu0 0.0
        %1214 = vmatpush1.msra.mxu0 %v1175
        %1215 = vmatprep.subr.mxu0 0.0
        %1216 = vmatpush2.msra.mxu0 0.0
        %1217 = vmatprep.subr.mxu0 0.0
        %1218 = vmatpush2.msra.mxu0 0.0
        %1219 = vmatprep.subr.mxu0 0.0
        %1220 = vmatpush2.msra.mxu0 0.0
        %1221 = vmatprep.subr.mxu0 0.0
        %1222 = vmatpush2.msra.mxu0 0.0
        %1223 = vmatprep.subr.mxu0 0.0
        %1224 = vmatpush2.msra.mxu0 0.0
        %1225 = vmatprep.subr.mxu0 0.0
        %1226 = vmatpush2.msra.mxu0 0.0
        %1227 = vmatprep.subr.mxu0 0.0
        %1228 = vmatpush2.msra.mxu0 0.0
        %1229 = vmatprep.subr.mxu0 0.0
        %1230 = vmatpush2.msra.mxu0 0.0
        %1231 = vmatprep.subr.mxu0 0.0
        %1232 = vmatpush2.msra.mxu0 0.0
        %1233 = vmatprep.subr.mxu0 0.0
        %1234 = vmatpush2.msra.mxu0 0.0
        %1235 = vmatprep.subr.mxu0 0.0
        %1236 = vmatpush2.msra.mxu0 0.0
        %1237 = vmatprep.subr.mxu0 0.0
        %1238 = vmatpush2.msra.mxu0 0.0
        %1239 = vmatprep.subr.mxu0 0.0
        %1240 = vmatpush2.msra.mxu0 0.0
        %1241 = vmatprep.subr.mxu0 0.0
        %1242 = vmatpush2.msra.mxu0 0.0
        %1243 = vmatprep.subr.mxu0 0.0
        %1244 = vmatpush2.msra.mxu0 0.0
        %1245 = vmatprep.subr.mxu0 0.0
        %1246 = vmatpush2.msra.mxu0 0.0
        %1247 = vmatprep.mubr.f32.mxu0 0.0
        %1248 = vmatmul.mubr.f32.gmra.mxu0 %v1179
        %v1249 = vpop.f32.mrf.mxu0
        %v1250 = vadd.f32 0.0, %v1249
        %v1251 = vpop.f32.mrf.mxu0
        %1252 = vmatprep.mubr.f32.mxu0 0.0
        %1253 = vmatmul.mubr.f32.gmra.mxu0 %v1181
        %v1254 = vpop.f32.mrf.mxu0
        %v1255 = vadd.f32 0.0, %v1254
        %v1256 = vpop.f32.mrf.mxu0
        %1257 = vdwg.mxu0
        %v1258 = vadd.f32 %v1167, %v1250
        %v1259 = vadd.f32 %v1172, %v1255
        %v1260 = vld [vmem:[%s8 + $0x1] sm:$0x1]
        %v1261 = vlaneseq
        %v1262 = vshrl.u32 %v1261, 7
        %v1263 = vsub.s32 0, %v1262
        %v1264 = vrot.slane %v1260, %v1263
        %v1265 = vadd.f32 %v1258, %v1264
        %v1266 = vadd.f32 %v1259, %v1264
        %v1267 = vxor.u32 %v1265, 2147483648
        %v1268 = vxor.u32 %v1266, 2147483648
        %v1269 = vmul.f32 %v1267, 1.442695
        %v1270 = vpow.pop %v1269
        %v1271 = vmul.f32 %v1268, 1.442695
        %v1272 = vpow.pop %v1271
        %v1273 = vadd.f32 %v1270, 1.0
        %v1274 = vadd.f32 %v1272, 1.0
        %v1275 = vrcp.pop %v1273
        %v1276 = vmul.f32 1.0, %v1275
        %v1277 = vrcp.pop %v1274
        %v1278 = vmul.f32 1.0, %v1277
        %v1279 = vld [vmem:[%s8 + $0x2] sm:$0x1]
        %v1280 = vlaneseq
        %v1281 = vshrl.u32 %v1280, 7
        %v1282 = vsub.s32 0, %v1281
        %v1283 = vrot.slane %v1279, %v1282
        %1285 = vrot.lane.b32.xlu0 %v1283, 32
        %v1286 = vpop.permute.xlu0 %1285
        %v1288 = vadd.f32 %v1258, %v1286
        %v1289 = vadd.f32 %v1259, %v1286
        %v1290 = vxor.u32 %v1288, 2147483648
        %v1291 = vxor.u32 %v1289, 2147483648
        %v1292 = vmul.f32 %v1290, 1.442695
        %v1293 = vpow.pop %v1292
        %v1294 = vmul.f32 %v1291, 1.442695
        %v1295 = vpow.pop %v1294
        %v1296 = vadd.f32 %v1293, 1.0
        %v1297 = vadd.f32 %v1295, 1.0
        %v1298 = vrcp.pop %v1296
        %v1299 = vmul.f32 1.0, %v1298
        %v1300 = vrcp.pop %v1297
        %v1301 = vmul.f32 1.0, %v1300
        %v1302 = vld [vmem:[%s8 + $0x3] sm:$0x1]
        %v1303 = vlaneseq
        %v1304 = vshrl.u32 %v1303, 7
        %v1305 = vsub.s32 0, %v1304
        %v1306 = vrot.slane %v1302, %v1305
        %1308 = vrot.lane.b32.xlu0 %v1306, 64
        %v1309 = vpop.permute.xlu0 %1308
        %v1311 = vadd.f32 %v1167, %v1309
        %v1312 = vadd.f32 %v1172, %v1309
        %v1313 = vld [vmem:[%s8 + $0x4] sm:$0x1]
        %v1314 = vlaneseq
        %v1315 = vshrl.u32 %v1314, 7
        %v1316 = vsub.s32 0, %v1315
        %v1317 = vrot.slane %v1313, %v1316
        %1319 = vrot.lane.b32.xlu0 %v1317, 64
        %v1320 = vpop.permute.xlu0 %1319
        %v1322 = vadd.f32 %v1250, %v1320
        %v1323 = vadd.f32 %v1255, %v1320
        %1326 = vrot.lane.b32.xlu0 %v1322, 64
        %v1327 = vpop.permute.xlu0 %1326
        %1328 = vrot.lane.b32.xlu0 %v1323, 64
        %v1329 = vpop.permute.xlu0 %1328
        %v1332 = vmul.f32 %v1276, %v1327
        %v1333 = vmul.f32 %v1278, %v1329
        %1336 = vrot.lane.b32.xlu0 %v1332, 64
        %v1337 = vpop.permute.xlu0 %1336
        %1338 = vrot.lane.b32.xlu0 %v1333, 64
        %v1339 = vpop.permute.xlu0 %1338
        %v1342 = vadd.f32 %v1311, %v1337
        %v1343 = vadd.f32 %v1312, %v1339
        %v1344 = vtanh.pop %v1342
        %v1345 = vtanh.pop %v1343
        %v1346 = vsub.f32 1.0, %v1299
        %v1347 = vsub.f32 1.0, %v1301
        %1350 = vrot.lane.b32.xlu0 %v1344, 96
        %v1351 = vpop.permute.xlu0 %1350
        %1352 = vrot.lane.b32.xlu0 %v1345, 96
        %v1353 = vpop.permute.xlu0 %1352
        %v1356 = vmul.f32 %v1346, %v1351
        %v1357 = vmul.f32 %v1347, %v1353
        %1358 = vrot.lane.b32.xlu0 %v479, 32
        %v1359 = vpop.permute.xlu0 %1358
        %1360 = vrot.lane.b32.xlu0 %v480, 32
        %v1361 = vpop.permute.xlu0 %1360
        %v1364 = vmul.f32 %v1299, %v1359
        %v1365 = vmul.f32 %v1301, %v1361
        %v1366 = vadd.f32 %v1356, %v1364
        %v1367 = vadd.f32 %v1357, %v1365
        %1370 = vrot.lane.b32.xlu0 %v1366, 96
        %v1371 = vpop.permute.xlu0 %1370
        %1372 = vrot.lane.b32.xlu0 %v1367, 96
        %v1373 = vpop.permute.xlu0 %1372
        %v1376 = vsel %vm490, %v1371, 0.0
        %1377 = vadd.xlane.f32.xlu0 %v1376
        %v1378 = vpop.xlane.xlu0 %1377
        %v1379 = vsel %vm490, %v1373, 0.0
        %1380 = vadd.xlane.f32.xlu0 %v1379
        %v1381 = vpop.xlane.xlu0 %1380
        %v1382 = vmul.f32 %v1366, %v1366
        %v1383 = vmul.f32 %v1367, %v1367
        %1386 = vrot.lane.b32.xlu0 %v1382, 96
        %v1387 = vpop.permute.xlu0 %1386
        %1388 = vrot.lane.b32.xlu0 %v1383, 96
        %v1389 = vpop.permute.xlu0 %1388
        %v1392 = vsel %vm490, %v1387, 0.0
        %1393 = vadd.xlane.f32.xlu0 %v1392
        %v1394 = vpop.xlane.xlu0 %1393
        %v1395 = vsel %vm490, %v1389, 0.0
        %1396 = vadd.xlane.f32.xlu0 %v1395
        %v1397 = vpop.xlane.xlu0 %1396
        %v1398 = vmul.f32 %v1378, 0.03125
        %v1399 = vmul.f32 %v1381, 0.03125
        %v1400 = vmul.f32 %v1394, 0.03125
        %v1401 = vmul.f32 %v1397, 0.03125
        %v1402 = vmul.f32 %v1398, %v1398
        %v1403 = vmul.f32 %v1399, %v1399
        %v1404 = vsub.f32 %v1400, %v1402
        %v1405 = vsub.f32 %v1401, %v1403
        %v1406 = vsub.f32 %v1366, %v1398
        %v1407 = vsub.f32 %v1367, %v1399
        %v1408 = vadd.f32 %v1404, 1e-05
        %v1409 = vadd.f32 %v1405, 1e-05
        %v1410 = vrsqrt.pop %v1408
        %v1411 = vrsqrt.pop %v1409
        %v1412 = vmul.f32 %v1406, %v1410
        %v1413 = vmul.f32 %v1407, %v1411
        %v1414 = vld [vmem:[%s8 + $0x5] sm:$0x1]
        %v1415 = vlaneseq
        %v1416 = vshrl.u32 %v1415, 7
        %v1417 = vsub.s32 0, %v1416
        %v1418 = vrot.slane %v1414, %v1417
        %1420 = vrot.lane.b32.xlu0 %v1418, 32
        %v1421 = vpop.permute.xlu0 %1420
        %v1423 = vmul.f32 %v1412, %v1421
        %v1424 = vmul.f32 %v1413, %v1421
        %v1425 = vld [vmem:[%s8 + $0x6] sm:$0x1]
        %v1426 = vlaneseq
        %v1427 = vshrl.u32 %v1426, 7
        %v1428 = vsub.s32 0, %v1427
        %v1429 = vrot.slane %v1425, %v1428
        %1431 = vrot.lane.b32.xlu0 %v1429, 32
        %v1432 = vpop.permute.xlu0 %1431
        %v1434 = vadd.f32 %v1423, %v1432
        %v1435 = vadd.f32 %v1424, %v1432
        %v1436 = vld [vmem:[%s9] sm:$0xff]
        %v1437 = vld [vmem:[%s9 + $0x8] sm:$0xff]
        %v1438 = vld [vmem:[%s9 + $0x10] sm:$0xff]
        %v1439 = vld [vmem:[%s9 + $0x18] sm:$0xff]
        %v1440 = vld [vmem:[%s10] sm:$0x1]
        %v1442 = vlaneseq
        %v1443 = vshrl.u32 %v1442, 7
        %v1444 = vsub.s32 0, %v1443
        %v1445 = vrot.slane %v1440, %v1444
        %1449 = vrot.lane.b32.xlu0 %v1434, 96
        %v1450 = vpop.permute.xlu0 %1449
        %1451 = vrot.lane.b32.xlu0 %v1435, 96
        %v1452 = vpop.permute.xlu0 %1451
        %v1453 = vsel %vm490, %v1450, 0
        %v1455 = vsel %vm490, %v1452, 0
        %1457 = vmatprep.subr.mxu0 0.0
        %1458 = vmatpush1.msra.mxu0 0.0
        %1459 = vmatprep.subr.mxu0 0.0
        %1460 = vmatpush1.msra.mxu0 0.0
        %1461 = vmatprep.subr.mxu0 0.0
        %1462 = vmatpush1.msra.mxu0 0.0
        %1463 = vmatprep.subr.mxu0 0.0
        %1464 = vmatpush1.msra.mxu0 0.0
        %1465 = vmatprep.subr.mxu0 0.0
        %1466 = vmatpush1.msra.mxu0 0.0
        %1467 = vmatprep.subr.mxu0 0.0
        %1468 = vmatpush1.msra.mxu0 0.0
        %1469 = vmatprep.subr.mxu0 0.0
        %1470 = vmatpush1.msra.mxu0 0.0
        %1471 = vmatprep.subr.mxu0 0.0
        %1472 = vmatpush1.msra.mxu0 0.0
        %1473 = vmatprep.subr.mxu0 0.0
        %1474 = vmatpush1.msra.mxu0 0.0
        %1475 = vmatprep.subr.mxu0 0.0
        %1476 = vmatpush1.msra.mxu0 0.0
        %1477 = vmatprep.subr.mxu0 0.0
        %1478 = vmatpush1.msra.mxu0 0.0
        %1479 = vmatprep.subr.mxu0 0.0
        %1480 = vmatpush1.msra.mxu0 0.0
        %1481 = vmatprep.subr.mxu0 0.0
        %1482 = vmatpush1.msra.mxu0 %v1439
        %1483 = vmatprep.subr.mxu0 0.0
        %1484 = vmatpush1.msra.mxu0 %v1438
        %1485 = vmatprep.subr.mxu0 0.0
        %1486 = vmatpush1.msra.mxu0 %v1437
        %1487 = vmatprep.subr.mxu0 0.0
        %1488 = vmatpush1.msra.mxu0 %v1436
        %1489 = vmatprep.subr.mxu0 0.0
        %1490 = vmatpush2.msra.mxu0 0.0
        %1491 = vmatprep.subr.mxu0 0.0
        %1492 = vmatpush2.msra.mxu0 0.0
        %1493 = vmatprep.subr.mxu0 0.0
        %1494 = vmatpush2.msra.mxu0 0.0
        %1495 = vmatprep.subr.mxu0 0.0
        %1496 = vmatpush2.msra.mxu0 0.0
        %1497 = vmatprep.subr.mxu0 0.0
        %1498 = vmatpush2.msra.mxu0 0.0
        %1499 = vmatprep.subr.mxu0 0.0
        %1500 = vmatpush2.msra.mxu0 0.0
        %1501 = vmatprep.subr.mxu0 0.0
        %1502 = vmatpush2.msra.mxu0 0.0
        %1503 = vmatprep.subr.mxu0 0.0
        %1504 = vmatpush2.msra.mxu0 0.0
        %1505 = vmatprep.subr.mxu0 0.0
        %1506 = vmatpush2.msra.mxu0 0.0
        %1507 = vmatprep.subr.mxu0 0.0
        %1508 = vmatpush2.msra.mxu0 0.0
        %1509 = vmatprep.subr.mxu0 0.0
        %1510 = vmatpush2.msra.mxu0 0.0
        %1511 = vmatprep.subr.mxu0 0.0
        %1512 = vmatpush2.msra.mxu0 0.0
        %1513 = vmatprep.subr.mxu0 0.0
        %1514 = vmatpush2.msra.mxu0 0.0
        %1515 = vmatprep.subr.mxu0 0.0
        %1516 = vmatpush2.msra.mxu0 0.0
        %1517 = vmatprep.subr.mxu0 0.0
        %1518 = vmatpush2.msra.mxu0 0.0
        %1519 = vmatprep.subr.mxu0 0.0
        %1520 = vmatpush2.msra.mxu0 0.0
        %1521 = vmatprep.mubr.f32.mxu0 0.0
        %1522 = vmatmul.mubr.f32.gmra.mxu0 %v1453
        %v1523 = vpop.f32.mrf.mxu0
        %v1524 = vadd.f32 %v1445, %v1523
        %v1525 = vpop.f32.mrf.mxu0
        %1526 = vmatprep.mubr.f32.mxu0 0.0
        %1527 = vmatmul.mubr.f32.gmra.mxu0 %v1455
        %v1528 = vpop.f32.mrf.mxu0
        %v1529 = vadd.f32 %v1445, %v1528
        %v1530 = vpop.f32.mrf.mxu0
        %1531 = vdwg.mxu0
        %v1532 = vmax.f32 %v1524, 0.0
        %v1533 = vmax.f32 %v1529, 0.0
        %v1534 = vld [vmem:[%s11] sm:$0xff]
        %v1535 = vld [vmem:[%s11 + $0x8] sm:$0xff]
        %v1536 = vld [vmem:[%s11 + $0x10] sm:$0xff]
        %v1537 = vld [vmem:[%s11 + $0x18] sm:$0xff]
        %v1538 = vld [vmem:[%s11 + $0x20] sm:$0xff]
        %v1539 = vld [vmem:[%s11 + $0x28] sm:$0xff]
        %v1540 = vld [vmem:[%s11 + $0x30] sm:$0xff]
        %v1541 = vld [vmem:[%s11 + $0x38] sm:$0xff]
        %v1542 = vld [vmem:[%s8 + $0x7] sm:$0x1]
        %v1543 = vlaneseq
        %v1544 = vshrl.u32 %v1543, 7
        %v1545 = vsub.s32 0, %v1544
        %v1546 = vrot.slane %v1542, %v1545
        %v1548 = vsel %vm695, %v1532, 0
        %v1551 = vsel %vm695, %v1533, 0
        %1553 = vmatprep.subr.mxu0 0.0
        %1554 = vmatpush1.msra.mxu0 0.0
        %1555 = vmatprep.subr.mxu0 0.0
        %1556 = vmatpush1.msra.mxu0 0.0
        %1557 = vmatprep.subr.mxu0 0.0
        %1558 = vmatpush1.msra.mxu0 0.0
        %1559 = vmatprep.subr.mxu0 0.0
        %1560 = vmatpush1.msra.mxu0 0.0
        %1561 = vmatprep.subr.mxu0 0.0
        %1562 = vmatpush1.msra.mxu0 0.0
        %1563 = vmatprep.subr.mxu0 0.0
        %1564 = vmatpush1.msra.mxu0 0.0
        %1565 = vmatprep.subr.mxu0 0.0
        %1566 = vmatpush1.msra.mxu0 0.0
        %1567 = vmatprep.subr.mxu0 0.0
        %1568 = vmatpush1.msra.mxu0 0.0
        %1569 = vmatprep.subr.mxu0 0.0
        %1570 = vmatpush1.msra.mxu0 %v1541
        %1571 = vmatprep.subr.mxu0 0.0
        %1572 = vmatpush1.msra.mxu0 %v1540
        %1573 = vmatprep.subr.mxu0 0.0
        %1574 = vmatpush1.msra.mxu0 %v1539
        %1575 = vmatprep.subr.mxu0 0.0
        %1576 = vmatpush1.msra.mxu0 %v1538
        %1577 = vmatprep.subr.mxu0 0.0
        %1578 = vmatpush1.msra.mxu0 %v1537
        %1579 = vmatprep.subr.mxu0 0.0
        %1580 = vmatpush1.msra.mxu0 %v1536
        %1581 = vmatprep.subr.mxu0 0.0
        %1582 = vmatpush1.msra.mxu0 %v1535
        %1583 = vmatprep.subr.mxu0 0.0
        %1584 = vmatpush1.msra.mxu0 %v1534
        %1585 = vmatprep.subr.mxu0 0.0
        %1586 = vmatpush2.msra.mxu0 0.0
        %1587 = vmatprep.subr.mxu0 0.0
        %1588 = vmatpush2.msra.mxu0 0.0
        %1589 = vmatprep.subr.mxu0 0.0
        %1590 = vmatpush2.msra.mxu0 0.0
        %1591 = vmatprep.subr.mxu0 0.0
        %1592 = vmatpush2.msra.mxu0 0.0
        %1593 = vmatprep.subr.mxu0 0.0
        %1594 = vmatpush2.msra.mxu0 0.0
        %1595 = vmatprep.subr.mxu0 0.0
        %1596 = vmatpush2.msra.mxu0 0.0
        %1597 = vmatprep.subr.mxu0 0.0
        %1598 = vmatpush2.msra.mxu0 0.0
        %1599 = vmatprep.subr.mxu0 0.0
        %1600 = vmatpush2.msra.mxu0 0.0
        %1601 = vmatprep.subr.mxu0 0.0
        %1602 = vmatpush2.msra.mxu0 0.0
        %1603 = vmatprep.subr.mxu0 0.0
        %1604 = vmatpush2.msra.mxu0 0.0
        %1605 = vmatprep.subr.mxu0 0.0
        %1606 = vmatpush2.msra.mxu0 0.0
        %1607 = vmatprep.subr.mxu0 0.0
        %1608 = vmatpush2.msra.mxu0 0.0
        %1609 = vmatprep.subr.mxu0 0.0
        %1610 = vmatpush2.msra.mxu0 0.0
        %1611 = vmatprep.subr.mxu0 0.0
        %1612 = vmatpush2.msra.mxu0 0.0
        %1613 = vmatprep.subr.mxu0 0.0
        %1614 = vmatpush2.msra.mxu0 0.0
        %1615 = vmatprep.subr.mxu0 0.0
        %1616 = vmatpush2.msra.mxu0 0.0
        %1617 = vmatprep.mubr.f32.mxu0 0.0
        %1618 = vmatmul.mubr.f32.gmra.mxu0 %v1548
        %v1619 = vpop.f32.mrf.mxu0
        %v1620 = vadd.f32 %v1546, %v1619
        %v1621 = vpop.f32.mrf.mxu0
        %1622 = vmatprep.mubr.f32.mxu0 0.0
        %1623 = vmatmul.mubr.f32.gmra.mxu0 %v1551
        %v1624 = vpop.f32.mrf.mxu0
        %v1625 = vadd.f32 %v1546, %v1624
        %v1626 = vpop.f32.mrf.mxu0
        %1627 = vdwg.mxu0
        %v1628 = vadd.f32 %v479, %v1620
        %v1629 = vadd.f32 %v480, %v1625
        %1630 = vst.msk [vmem:[%s454] sm:$0xff] %vm490, %v1628
        %1631 = vst.msk [vmem:[%s454 + $0x8] sm:$0xff] %vm490, %v1629
        %s1632 = sand.u32 %s301, 1
        %s1633 = scalar_lea.sflag [#allocation3], %s1632
        %s1634 = sand.u32 %s301, 1
        %s1635 = smul.addr %s1634, 16
        %s1636 = scalar_lea.vmem [#allocation2], %s1635
        %s1637 = sand.u32 %s327, 1
        %s1638 = scalar_lea.sflag [#allocation5], %s1637
        %s1639 = sand.u32 %s327, 1
        %s1640 = smul.addr %s1639, 8
        %s1641 = scalar_lea.vmem [#allocation4], %s1640
        // Predicated region
        $region69: #{tpu_custom_call.1} parent=67 // pred_check
          %p1642 = pneg %p311
        $region70: #{tpu_custom_call.1} parent=67 // pred_check_branch
          %1644 = sbr.rel (%p1642) target = $region72
        $region71: #{tpu_custom_call.1} parent=67 // pred_region
          %s1645 = smul.u32 2, %s31
          %s1647 = ssub.s32 256, 256
          %1648 = vsyncadd %s1633, %s1647
          %s1649 = smul.addr %s1645, 128
          %s1650 = scalar_lea.hbm %s12, %s1649
          %s1651 = sshll.u32 %s1636, 4
          %s1652 = int_to_ptr.vmem [resolvable:$true] %s1651
          %1657 = dma.vmem_to_hbm [thread:$0]  %s1652, 256, %s1650, %s1633, 128, 128, 8
        $region72: #{tpu_custom_call.1} parent=67 // pred_fallthru
          _
        // Predicated region
        $region73: #{tpu_custom_call.1} parent=67 // pred_check
          %p1658 = pneg %p337
        $region74: #{tpu_custom_call.1} parent=67 // pred_check_branch
          %1660 = sbr.rel (%p1658) target = $region76
        $region75: #{tpu_custom_call.1} parent=67 // pred_region
          %s1662 = ssub.s32 128, 128
          %1663 = vsyncadd %s1638, %s1662
          %s1664 = smul.addr %s31, 128
          %s1665 = scalar_lea.hbm %s13, %s1664
          %s1667 = sshll.u32 %s1641, 4
          %s1668 = int_to_ptr.vmem [resolvable:$true] %s1667
          %1670 = dma.vmem_to_hbm [thread:$0]  %s1668, 128, %s1665, %s1638
        $region76: #{tpu_custom_call.1} parent=67 // pred_fallthru
          _
      $region68: #{tpu_custom_call.1} parent=5 // pred_fallthru
        _
      %p1671 = scmp.le.s32.totalorder 2, %s26
      // Predicated region
      $region77: #{tpu_custom_call.1} parent=5 // pred_check
        %p1672 = pneg %p1671
      $region78: #{tpu_custom_call.1} parent=5 // pred_check_branch
        %1674 = sbr.rel (%p1672) target = $region80
      $region79: #{tpu_custom_call.1} parent=5 // pred_region
        %s1675 = ssub.s32 %s26, 2
        // Predicated region
        $region81: #{tpu_custom_call.1} parent=79 // pred_check
          %p1676 = pneg %p317
        $region82: #{tpu_custom_call.1} parent=79 // pred_check_branch
          %1678 = sbr.rel (%p1676) target = $region84
        $region83: #{tpu_custom_call.1} parent=79 // pred_region
          %s1679 = sand.u32 %s302, 1
          %s1680 = scalar_lea.sflag [#allocation3], %s1679
          %s1681 = sand.u32 %s302, 1
          %s1682 = smul.addr %s1681, 16
          %s1683 = scalar_lea.vmem [#allocation2], %s1682
          %1684 = dma.done %s1680, 256
        $region84: #{tpu_custom_call.1} parent=79 // pred_fallthru
          _
        // Predicated region
        $region85: #{tpu_custom_call.1} parent=79 // pred_check
          %p1685 = pneg %p343
        $region86: #{tpu_custom_call.1} parent=79 // pred_check_branch
          %1687 = sbr.rel (%p1685) target = $region88
        $region87: #{tpu_custom_call.1} parent=79 // pred_region
          %s1688 = sand.u32 %s328, 1
          %s1689 = scalar_lea.sflag [#allocation5], %s1688
          %s1690 = sand.u32 %s328, 1
          %s1691 = smul.addr %s1690, 8
          %s1692 = scalar_lea.vmem [#allocation4], %s1691
          %1693 = dma.done %s1689, 128
        $region88: #{tpu_custom_call.1} parent=79 // pred_fallthru
          _
      $region80: #{tpu_custom_call.1} parent=5 // pred_fallthru
        _
    $region6: #{tpu_custom_call.1} parent=1 // loop_footer
      %s30 = sadd.s32 1, %s26
    $region7: #{tpu_custom_call.1} parent=1 // loop_footer_branch
      %25 = sbr.rel target = $region3
    $region8: #{tpu_custom_call.1} parent=1 // loop_exit
      _
    %1694 = vsyncpa [#allocation3], 1
    %s1695 = scalar_lea.sflag [#allocation3], 1
    %1696 = vsyncpa %s1695, 1
    %1697 = vsyncpa [#allocation5], 1
    %s1698 = scalar_lea.sflag [#allocation5], 1
    %1699 = vsyncpa %s1698, 1

</llo_original>
